<compile_context>
chip_gen: v7x
topology: tpu7x:2x2x1
jax: 0.10.0
libtpu: 0.0.40
codegen_flags: <defaults>
</compile_context>

<pallas_src>
import functools

import numpy as np
import jax
import jax.numpy as jnp
from jax import lax
from jax.experimental import pallas as pl
from jax.experimental.pallas import tpu as pltpu


# --------------------------- fused forward kernel --------------------------- #
def _data_embedding_kernel(
    x_ref, xt_ref,
    w1f_ref, w2f_ref, bf_ref, af_ref, biasf_ref,
    w1t_ref, w2t_ref, bt_ref, at_ref, biast_ref,
    wx_ref, wh_ref, pprev_ref, pnext_ref,
    o_ref, *, alpha):
    """One batch element per grid step; everything stays in VMEM / vregs.

    x_ref        : (W, C)     input window (channel-last)
    xt_ref       : (C, W)     input window transposed (feature-GAT node view)
    w1f/w2f      : (W, E)     feature-GAT lin weight split (acts on v_i / v_j)
    bf, af       : (1, E)     feature-GAT lin bias / attention vector a
    biasf        : (C, C)     feature-GAT additive attention bias
    w1t/w2t      : (C, E)     temporal-GAT lin weight split
    bt, at       : (1, E)     temporal-GAT lin bias / attention vector a
    biast        : (W, W)     temporal-GAT additive attention bias
    wx, wh       : (3, C, D)  conv taps acting on the x rows (pre-scaled by 2)
                              and on the h rows of cat(x, h)
    pprev, pnext : (W, W)     cyclic +/-1 time-shift permutation matrices
    o_ref        : (W, D)     output
    """
    f32 = jnp.float32
    xb = x_ref[...]          # (W, C)
    xt = xt_ref[...]         # (C, W)

    def attention(P, Q, a_row, att_bias):
        # GATv2: e_ij = a . leakyrelu(W[v_i || v_j] + b) == a . leakyrelu(P_i + Q_j)
        S = P[:, None, :] + Q[None, :, :]                 # (K, K, E)
        S = jnp.where(S >= 0, S, alpha * S)               # LeakyReLU(alpha)
        e = jnp.sum(S * a_row, axis=-1) + att_bias        # (K, K), XLU reduce
        m = jnp.max(e, axis=-1, keepdims=True)
        p = jnp.exp(e - m)                                # EUP
        denom = jnp.sum(p, axis=-1, keepdims=True)
        return p * pl.reciprocal(denom, approx=True)      # softmax (EUP reciprocal)

    # ---- Feature GAT: nodes = channels, per-node signal = time window ----
    Pf = jnp.dot(xt, w1f_ref[...], preferred_element_type=f32)                 # (C, E)
    Qf = jnp.dot(xt, w2f_ref[...], preferred_element_type=f32) + bf_ref[...]   # (C, E)
    attn_f = attention(Pf, Qf, af_ref[...], biasf_ref[...])                    # (C, C)
    # h_feat directly in (W, C) layout: sigmoid(attn @ x^T)^T == sigmoid(x @ attn^T)
    h_f = jax.nn.sigmoid(
        lax.dot_general(xb, attn_f, (((1,), (1,)), ((), ())),
                        preferred_element_type=f32))                           # (W, C)

    # ---- Temporal GAT: nodes = time steps ----
    Pt = jnp.dot(xb, w1t_ref[...], preferred_element_type=f32)                 # (W, E)
    Qt = jnp.dot(xb, w2t_ref[...], preferred_element_type=f32) + bt_ref[...]   # (W, E)
    attn_t = attention(Pt, Qt, at_ref[...], biast_ref[...])                    # (W, W)
    h_t = jax.nn.sigmoid(jnp.dot(attn_t, xb, preferred_element_type=f32))      # (W, C)

    # conv is linear and both branches share the x half of the concat:
    #   conv(x||h_feat) + conv(x||h_temp) = conv_x'(x) + conv_h(h_feat + h_temp)
    # (factor 2 of the shared x half is pre-folded into wx)
    h = h_f + h_t                                                              # (W, C)

    # ---- shared circular Conv1d (kernel=3, padding=1, circular, no bias) ----
    # out[t] = sum_k A_k[(t + k - 1) mod W],  A_k = x@Wx'_k + h@Wh_k
    A0 = jnp.dot(xb, wx_ref[0], preferred_element_type=f32) \
         + jnp.dot(h, wh_ref[0], preferred_element_type=f32)
    A1 = jnp.dot(xb, wx_ref[1], preferred_element_type=f32) \
         + jnp.dot(h, wh_ref[1], preferred_element_type=f32)
    A2 = jnp.dot(xb, wx_ref[2], preferred_element_type=f32) \
         + jnp.dot(h, wh_ref[2], preferred_element_type=f32)

    # Cyclic +1 / -1 time shifts as tiny (W, W) permutation matmuls (MXU idle
    # here); permutation matrices are precomputed on the host and fetched once.
    out = jnp.dot(pprev_ref[...], A0, preferred_element_type=f32) + A1 \
          + jnp.dot(pnext_ref[...], A2, preferred_element_type=f32)

    # nn.Dropout(p=0.0) is the identity.
    # TODO(synk): stochastic dropout for p>0 (pltpu.prng_*) not implemented in-kernel.
    o_ref[...] = out.astype(o_ref.dtype)


# ------------------------------- parameters -------------------------------- #
def init_params(key, c_in, d_model, win_size):
    ks = jax.random.split(key, 9)
    E = 2 * d_model  # embed_dim doubles under GATv2
    return {
        # FeatureAttentionLayer: lin(2*win_size -> E), a (E,1), bias (c_in, c_in)
        "feat_w": jax.random.normal(ks[0], (2 * win_size, E), jnp.float32) * 0.1,
        "feat_b": jax.random.normal(ks[1], (E,), jnp.float32) * 0.1,
        "feat_a": jax.random.normal(ks[2], (E, 1), jnp.float32) * 0.1,
        "feat_bias": jax.random.normal(ks[3], (c_in, c_in), jnp.float32) * 0.1,
        # TemporalAttentionLayer: lin(2*c_in -> E), a (E,1), bias (W, W)
        "temp_w": jax.random.normal(ks[4], (2 * c_in, E), jnp.float32) * 0.1,
        "temp_b": jax.random.normal(ks[5], (E,), jnp.float32) * 0.1,
        "temp_a": jax.random.normal(ks[6], (E, 1), jnp.float32) * 0.1,
        "temp_bias": jax.random.normal(ks[7], (win_size, win_size), jnp.float32) * 0.1,
        # TokenEmbedding Conv1d weight (d_model, 2*c_in, 3), no bias
        "conv_w": jax.random.normal(ks[8], (d_model, 2 * c_in, 3), jnp.float32) * 0.1,
    }


def prepare_kernel_params(params, c_in, win_size):
    """One-time conversion to kernel layout (hoisted out of the per-call forward)."""
    E = params["feat_w"].shape[1]
    cw = params["conv_w"]                                            # (D, 2C, 3)
    # Taps on x rows pre-scaled by 2 (x half of the concat is shared by both branches).
    wx = 2.0 * jnp.stack([cw[:, :c_in, k].T for k in range(3)], 0)   # (3, C, D)
    wh = jnp.stack([cw[:, c_in:, k].T for k in range(3)], 0)         # (3, C, D)
    # Cyclic time-shift permutation matrices, built once on the host.
    eye = np.eye(win_size, dtype=np.float32)
    p_prev = jnp.asarray(np.roll(eye, -1, axis=1))   # picks row (t-1) mod W
    p_next = jnp.asarray(np.roll(eye, 1, axis=1))    # picks row (t+1) mod W
    return dict(
        w1f=params["feat_w"][:win_size], w2f=params["feat_w"][win_size:],
        bf=params["feat_b"].reshape(1, E), af=params["feat_a"].reshape(1, E),
        bias_f=params["feat_bias"],
        w1t=params["temp_w"][:c_in], w2t=params["temp_w"][c_in:],
        bt=params["temp_b"].reshape(1, E), at=params["temp_a"].reshape(1, E),
        bias_t=params["temp_bias"],
        wx=wx, wh=wh, p_prev=p_prev, p_next=p_next)


# ------------------------------ full forward -------------------------------- #
def data_embedding_forward(x, kp, alpha=0.2):
    """x: (B, win_size, c_in) -> (B, win_size, d_model).  One fused pallas_call."""
    B, W, C = x.shape
    E = kp["w1f"].shape[1]
    D = kp["wx"].shape[-1]
    xt = jnp.transpose(x, (0, 2, 1))   # (B, C, W) feature-GAT node view (tiny, once)

    flops = 2 * B * (2 * C * W * E + 2 * W * C * E          # lin projections
                     + 3 * (C * C * E + W * W * E)          # attention scores
                     + W * C * C + W * W * C                # attn @ v
                     + 6 * W * C * D + 2 * W * W * D)       # conv taps + cyclic shifts
    transcendentals = B * (C * C + W * W + 2 * W * C + C + W)
    bytes_accessed = 4 * (2 * B * W * C + B * W * D + 2 * W * E + 2 * C * E
                          + 4 * E + C * C + 3 * W * W + 6 * C * D)

    wspec = lambda r, c: pl.BlockSpec((r, c), lambda b: (0, 0))
    return pl.pallas_call(
        functools.partial(_data_embedding_kernel, alpha=alpha),
        out_shape=jax.ShapeDtypeStruct((B, W, D), jnp.float32),
        grid=(B,),
        in_specs=[
            pl.BlockSpec((None, W, C), lambda b: (b, 0, 0)),   # x
            pl.BlockSpec((None, C, W), lambda b: (b, 0, 0)),   # x^T
            wspec(W, E), wspec(W, E),                          # w1f, w2f
            wspec(1, E), wspec(1, E),                          # bf, af
            wspec(C, C),                                       # bias_f
            wspec(C, E), wspec(C, E),                          # w1t, w2t
            wspec(1, E), wspec(1, E),                          # bt, at
            wspec(W, W),                                       # bias_t
            pl.BlockSpec((3, C, D), lambda b: (0, 0, 0)),      # wx
            pl.BlockSpec((3, C, D), lambda b: (0, 0, 0)),      # wh
            wspec(W, W), wspec(W, W),                          # p_prev, p_next
        ],
        out_specs=pl.BlockSpec((None, W, D), lambda b: (b, 0, 0)),
        compiler_params=pltpu.CompilerParams(dimension_semantics=("parallel",)),
        cost_estimate=pl.CostEstimate(flops=flops, transcendentals=transcendentals,
                                      bytes_accessed=bytes_accessed),
    )(x, xt,
      kp["w1f"], kp["w2f"], kp["bf"], kp["af"], kp["bias_f"],
      kp["w1t"], kp["w2t"], kp["bt"], kp["at"], kp["bias_t"],
      kp["wx"], kp["wh"], kp["p_prev"], kp["p_next"])


# ----------------------------- pure-JAX reference -------------------------- #
def _gat_ref(v, w_lin, b_lin, a_vec, att_bias, alpha):
    B, K, Din = v.shape
    rep = jnp.repeat(v, K, axis=1)
    alt = jnp.tile(v, (1, K, 1))
    comb = jnp.concatenate([rep, alt], axis=2).reshape(B, K, K, 2 * Din)
    ai = comb @ w_lin + b_lin
    ai = jnp.where(ai >= 0, ai, alpha * ai)
    e = (ai @ a_vec)[..., 0] + att_bias
    attn = jax.nn.softmax(e, axis=2)
    return jax.nn.sigmoid(attn @ v)


def _ref_forward(x, params, alpha=0.2):
    v_feat = jnp.transpose(x, (0, 2, 1))
    h_feat = jnp.transpose(
        _gat_ref(v_feat, params["feat_w"], params["feat_b"], params["feat_a"],
                 params["feat_bias"], alpha), (0, 2, 1))
    h_feat_cat = jnp.concatenate([x, h_feat], axis=2)
    h_temp = _gat_ref(x, params["temp_w"], params["temp_b"], params["temp_a"],
                      params["temp_bias"], alpha)
    h_temp_cat = jnp.concatenate([x, h_temp], axis=2)

    def conv(xc):
        w = params["conv_w"]
        out = jnp.zeros((xc.shape[0], xc.shape[1], w.shape[0]), jnp.float32)
        for k in range(3):
            out = out + jnp.roll(xc, 1 - k, axis=1) @ w[:, :, k].T
        return out

    return conv(h_feat_cat) + conv(h_temp_cat)


# ----------------------------------- main ----------------------------------- #
if __name__ == "__main__":
    B, win_size, c_in, d_model = 2, 8, 4, 32
    key = jax.random.PRNGKey(0)
    kx, kparams = jax.random.split(key)
    x = jax.random.normal(kx, (B, win_size, c_in), jnp.float32)
    params = init_params(kparams, c_in, d_model, win_size)
    kp = prepare_kernel_params(params, c_in, win_size)   # hoisted, done once

    fwd = jax.jit(data_embedding_forward)
    out = jax.block_until_ready(fwd(x, kp))
    ref = jax.block_until_ready(_ref_forward(x, params))

    assert out.shape == (B, win_size, d_model), out.shape
    np.testing.assert_allclose(np.asarray(out), np.asarray(ref), rtol=2e-2, atol=2e-2)
    print("KERNEL_OK")
</pallas_src>

<mosaic_0001>
module attributes {stable_mosaic.version = 11 : i64} {
  func.func @_data_embedding_kernel(%arg0: i32, %arg1: memref<1x8x4xf32, #tpu.memory_space<vmem>>, %arg2: memref<1x4x8xf32, #tpu.memory_space<vmem>>, %arg3: memref<8x64xf32, #tpu.memory_space<vmem>>, %arg4: memref<8x64xf32, #tpu.memory_space<vmem>>, %arg5: memref<1x64xf32, #tpu.memory_space<vmem>>, %arg6: memref<1x64xf32, #tpu.memory_space<vmem>>, %arg7: memref<4x4xf32, #tpu.memory_space<vmem>>, %arg8: memref<4x64xf32, #tpu.memory_space<vmem>>, %arg9: memref<4x64xf32, #tpu.memory_space<vmem>>, %arg10: memref<1x64xf32, #tpu.memory_space<vmem>>, %arg11: memref<1x64xf32, #tpu.memory_space<vmem>>, %arg12: memref<8x8xf32, #tpu.memory_space<vmem>>, %arg13: memref<3x4x32xf32, #tpu.memory_space<vmem>>, %arg14: memref<3x4x32xf32, #tpu.memory_space<vmem>>, %arg15: memref<8x8xf32, #tpu.memory_space<vmem>>, %arg16: memref<8x8xf32, #tpu.memory_space<vmem>>, %arg17: memref<1x8x32xf32, #tpu.memory_space<vmem>>) attributes {dimension_semantics = [#tpu.dimension_semantics<parallel>], iteration_bounds = array<i64: 2>, scalar_prefetch = 0 : i64, scratch_operands = 0 : i64, tpu.core_type = #tpu.core_type<tc>, window_params = [{transform_indices = @transform_0, window_bounds = array<i64: 1, 8, 4>}, {transform_indices = @transform_1, window_bounds = array<i64: 1, 4, 8>}, {pipeline_mode = #tpu.pipeline_mode<synchronous>, transform_indices = @transform_2, window_bounds = array<i64: 8, 64>}, {pipeline_mode = #tpu.pipeline_mode<synchronous>, transform_indices = @transform_3, window_bounds = array<i64: 8, 64>}, {pipeline_mode = #tpu.pipeline_mode<synchronous>, transform_indices = @transform_4, window_bounds = array<i64: 1, 64>}, {pipeline_mode = #tpu.pipeline_mode<synchronous>, transform_indices = @transform_5, window_bounds = array<i64: 1, 64>}, {pipeline_mode = #tpu.pipeline_mode<synchronous>, transform_indices = @transform_6, window_bounds = array<i64: 4, 4>}, {pipeline_mode = #tpu.pipeline_mode<synchronous>, transform_indices = @transform_7, window_bounds = array<i64: 4, 64>}, {pipeline_mode = #tpu.pipeline_mode<synchronous>, transform_indices = @transform_8, window_bounds = array<i64: 4, 64>}, {pipeline_mode = #tpu.pipeline_mode<synchronous>, transform_indices = @transform_9, window_bounds = array<i64: 1, 64>}, {pipeline_mode = #tpu.pipeline_mode<synchronous>, transform_indices = @transform_10, window_bounds = array<i64: 1, 64>}, {pipeline_mode = #tpu.pipeline_mode<synchronous>, transform_indices = @transform_11, window_bounds = array<i64: 8, 8>}, {pipeline_mode = #tpu.pipeline_mode<synchronous>, transform_indices = @transform_12, window_bounds = array<i64: 3, 4, 32>}, {pipeline_mode = #tpu.pipeline_mode<synchronous>, transform_indices = @transform_13, window_bounds = array<i64: 3, 4, 32>}, {pipeline_mode = #tpu.pipeline_mode<synchronous>, transform_indices = @transform_14, window_bounds = array<i64: 8, 8>}, {pipeline_mode = #tpu.pipeline_mode<synchronous>, transform_indices = @transform_15, window_bounds = array<i64: 8, 8>}, {transform_indices = @transform_16, window_bounds = array<i64: 1, 8, 32>}]} {
    %c0 = arith.constant 0 : index
    %c0_0 = arith.constant 0 : index
    %c0_1 = arith.constant 0 : index
    %0 = vector.load %arg1[%c0, %c0_0, %c0_1] : memref<1x8x4xf32, #tpu.memory_space<vmem>>, vector<1x8x4xf32>
    %1 = vector.shape_cast %0 : vector<1x8x4xf32> to vector<8x4xf32>
    %c0_2 = arith.constant 0 : index
    %c0_3 = arith.constant 0 : index
    %c0_4 = arith.constant 0 : index
    %2 = vector.load %arg2[%c0_2, %c0_3, %c0_4] : memref<1x4x8xf32, #tpu.memory_space<vmem>>, vector<1x4x8xf32>
    %3 = vector.shape_cast %2 : vector<1x4x8xf32> to vector<4x8xf32>
    %c0_5 = arith.constant 0 : index
    %c0_6 = arith.constant 0 : index
    %4 = vector.load %arg3[%c0_5, %c0_6] : memref<8x64xf32, #tpu.memory_space<vmem>>, vector<8x64xf32>
    %cst = arith.constant dense<0.000000e+00> : vector<4x64xf32>
    %5 = tpu.matmul %3, %4, %cst {dimension_numbers = #tpu.dot_dimension_numbers<[1], [0], [0], [1], [0, 0, 1, 1], [], []>} : vector<4x8xf32>, vector<8x64xf32>, vector<4x64xf32> -> vector<4x64xf32>
    %c0_7 = arith.constant 0 : index
    %c0_8 = arith.constant 0 : index
    %6 = vector.load %arg4[%c0_7, %c0_8] : memref<8x64xf32, #tpu.memory_space<vmem>>, vector<8x64xf32>
    %cst_9 = arith.constant dense<0.000000e+00> : vector<4x64xf32>
    %7 = tpu.matmul %3, %6, %cst_9 {dimension_numbers = #tpu.dot_dimension_numbers<[1], [0], [0], [1], [0, 0, 1, 1], [], []>} : vector<4x8xf32>, vector<8x64xf32>, vector<4x64xf32> -> vector<4x64xf32>
    %c0_10 = arith.constant 0 : index
    %c0_11 = arith.constant 0 : index
    %8 = vector.load %arg5[%c0_10, %c0_11] : memref<1x64xf32, #tpu.memory_space<vmem>>, vector<1x64xf32>
    %9 = vector.broadcast %8 : vector<1x64xf32> to vector<4x64xf32>
    %10 = arith.addf %7, %9 : vector<4x64xf32>
    %c0_12 = arith.constant 0 : index
    %c0_13 = arith.constant 0 : index
    %11 = vector.load %arg6[%c0_12, %c0_13] : memref<1x64xf32, #tpu.memory_space<vmem>>, vector<1x64xf32>
    %c0_14 = arith.constant 0 : index
    %c0_15 = arith.constant 0 : index
    %12 = vector.load %arg7[%c0_14, %c0_15] : memref<4x4xf32, #tpu.memory_space<vmem>>, vector<4x4xf32>
    %13 = vector.shape_cast %5 : vector<4x64xf32> to vector<4x1x64xf32>
    %14 = vector.shape_cast %10 : vector<4x64xf32> to vector<1x4x64xf32>
    %15 = vector.broadcast %13 : vector<4x1x64xf32> to vector<4x4x64xf32>
    %16 = vector.broadcast %14 : vector<1x4x64xf32> to vector<4x4x64xf32>
    %17 = arith.addf %15, %16 : vector<4x4x64xf32>
    %cst_16 = arith.constant 0.000000e+00 : f32
    %18 = vector.broadcast %cst_16 : f32 to vector<4x4x64xf32>
    %19 = arith.cmpf oge, %17, %18 : vector<4x4x64xf32>
    %cst_17 = arith.constant 2.000000e-01 : f32
    %20 = vector.broadcast %cst_17 : f32 to vector<4x4x64xf32>
    %21 = arith.mulf %20, %17 : vector<4x4x64xf32>
    %22 = arith.select %19, %17, %21 : vector<4x4x64xi1>, vector<4x4x64xf32>
    %23 = vector.shape_cast %11 : vector<1x64xf32> to vector<1x1x64xf32>
    %24 = vector.broadcast %23 : vector<1x1x64xf32> to vector<4x4x64xf32>
    %25 = arith.mulf %22, %24 : vector<4x4x64xf32>
    %cst_18 = arith.constant dense<0.000000e+00> : vector<4x4xf32>
    %26 = vector.multi_reduction <add>, %25, %cst_18 [2] : vector<4x4x64xf32> to vector<4x4xf32>
    %27 = arith.addf %26, %12 : vector<4x4xf32>
    %cst_19 = arith.constant dense<0xFF800000> : vector<4xf32>
    %28 = vector.multi_reduction <maximumf>, %27, %cst_19 [1] : vector<4x4xf32> to vector<4xf32>
    %29 = vector.shape_cast %28 : vector<4xf32> to vector<4x1xf32>
    %30 = vector.broadcast %29 : vector<4x1xf32> to vector<4x4xf32>
    %31 = arith.subf %27, %30 : vector<4x4xf32>
    %32 = math.exp %31 : vector<4x4xf32>
    %cst_20 = arith.constant dense<0.000000e+00> : vector<4xf32>
    %33 = vector.multi_reduction <add>, %32, %cst_20 [1] : vector<4x4xf32> to vector<4xf32>
    %34 = vector.shape_cast %33 : vector<4xf32> to vector<4x1xf32>
    %35 = tpu.reciprocal %34 {approx = true} : vector<4x1xf32> -> vector<4x1xf32>
    %36 = vector.broadcast %35 : vector<4x1xf32> to vector<4x4xf32>
    %37 = arith.mulf %32, %36 : vector<4x4xf32>
    %cst_21 = arith.constant dense<0.000000e+00> : vector<8x4xf32>
    %38 = tpu.matmul %1, %37, %cst_21 {dimension_numbers = #tpu.dot_dimension_numbers<[1], [1], [0], [0], [0, 0, 1, 0], [], []>} : vector<8x4xf32>, vector<4x4xf32>, vector<8x4xf32> -> vector<8x4xf32>
    %39 = arith.negf %38 : vector<8x4xf32>
    %40 = math.exp %39 : vector<8x4xf32>
    %cst_22 = arith.constant 1.000000e+00 : f32
    %41 = vector.broadcast %cst_22 : f32 to vector<8x4xf32>
    %42 = arith.addf %41, %40 : vector<8x4xf32>
    %43 = arith.divf %41, %42 : vector<8x4xf32>
    %c0_23 = arith.constant 0 : index
    %c0_24 = arith.constant 0 : index
    %44 = vector.load %arg8[%c0_23, %c0_24] : memref<4x64xf32, #tpu.memory_space<vmem>>, vector<4x64xf32>
    %cst_25 = arith.constant dense<0.000000e+00> : vector<8x64xf32>
    %45 = tpu.matmul %1, %44, %cst_25 {dimension_numbers = #tpu.dot_dimension_numbers<[1], [0], [0], [1], [0, 0, 1, 1], [], []>} : vector<8x4xf32>, vector<4x64xf32>, vector<8x64xf32> -> vector<8x64xf32>
    %c0_26 = arith.constant 0 : index
    %c0_27 = arith.constant 0 : index
    %46 = vector.load %arg9[%c0_26, %c0_27] : memref<4x64xf32, #tpu.memory_space<vmem>>, vector<4x64xf32>
    %cst_28 = arith.constant dense<0.000000e+00> : vector<8x64xf32>
    %47 = tpu.matmul %1, %46, %cst_28 {dimension_numbers = #tpu.dot_dimension_numbers<[1], [0], [0], [1], [0, 0, 1, 1], [], []>} : vector<8x4xf32>, vector<4x64xf32>, vector<8x64xf32> -> vector<8x64xf32>
    %c0_29 = arith.constant 0 : index
    %c0_30 = arith.constant 0 : index
    %48 = vector.load %arg10[%c0_29, %c0_30] : memref<1x64xf32, #tpu.memory_space<vmem>>, vector<1x64xf32>
    %49 = vector.broadcast %48 : vector<1x64xf32> to vector<8x64xf32>
    %50 = arith.addf %47, %49 : vector<8x64xf32>
    %c0_31 = arith.constant 0 : index
    %c0_32 = arith.constant 0 : index
    %51 = vector.load %arg11[%c0_31, %c0_32] : memref<1x64xf32, #tpu.memory_space<vmem>>, vector<1x64xf32>
    %c0_33 = arith.constant 0 : index
    %c0_34 = arith.constant 0 : index
    %52 = vector.load %arg12[%c0_33, %c0_34] : memref<8x8xf32, #tpu.memory_space<vmem>>, vector<8x8xf32>
    %53 = vector.shape_cast %45 : vector<8x64xf32> to vector<8x1x64xf32>
    %54 = vector.shape_cast %50 : vector<8x64xf32> to vector<1x8x64xf32>
    %55 = vector.broadcast %53 : vector<8x1x64xf32> to vector<8x8x64xf32>
    %56 = vector.broadcast %54 : vector<1x8x64xf32> to vector<8x8x64xf32>
    %57 = arith.addf %55, %56 : vector<8x8x64xf32>
    %cst_35 = arith.constant 0.000000e+00 : f32
    %58 = vector.broadcast %cst_35 : f32 to vector<8x8x64xf32>
    %59 = arith.cmpf oge, %57, %58 : vector<8x8x64xf32>
    %cst_36 = arith.constant 2.000000e-01 : f32
    %60 = vector.broadcast %cst_36 : f32 to vector<8x8x64xf32>
    %61 = arith.mulf %60, %57 : vector<8x8x64xf32>
    %62 = arith.select %59, %57, %61 : vector<8x8x64xi1>, vector<8x8x64xf32>
    %63 = vector.shape_cast %51 : vector<1x64xf32> to vector<1x1x64xf32>
    %64 = vector.broadcast %63 : vector<1x1x64xf32> to vector<8x8x64xf32>
    %65 = arith.mulf %62, %64 : vector<8x8x64xf32>
    %cst_37 = arith.constant dense<0.000000e+00> : vector<8x8xf32>
    %66 = vector.multi_reduction <add>, %65, %cst_37 [2] : vector<8x8x64xf32> to vector<8x8xf32>
    %67 = arith.addf %66, %52 : vector<8x8xf32>
    %cst_38 = arith.constant dense<0xFF800000> : vector<8xf32>
    %68 = vector.multi_reduction <maximumf>, %67, %cst_38 [1] : vector<8x8xf32> to vector<8xf32>
    %69 = vector.shape_cast %68 : vector<8xf32> to vector<8x1xf32>
    %70 = vector.broadcast %69 : vector<8x1xf32> to vector<8x8xf32>
    %71 = arith.subf %67, %70 : vector<8x8xf32>
    %72 = math.exp %71 : vector<8x8xf32>
    %cst_39 = arith.constant dense<0.000000e+00> : vector<8xf32>
    %73 = vector.multi_reduction <add>, %72, %cst_39 [1] : vector<8x8xf32> to vector<8xf32>
    %74 = vector.shape_cast %73 : vector<8xf32> to vector<8x1xf32>
    %75 = tpu.reciprocal %74 {approx = true} : vector<8x1xf32> -> vector<8x1xf32>
    %76 = vector.broadcast %75 : vector<8x1xf32> to vector<8x8xf32>
    %77 = arith.mulf %72, %76 : vector<8x8xf32>
    %cst_40 = arith.constant dense<0.000000e+00> : vector<8x4xf32>
    %78 = tpu.matmul %77, %1, %cst_40 {dimension_numbers = #tpu.dot_dimension_numbers<[1], [0], [0], [1], [0, 0, 1, 1], [], []>} : vector<8x8xf32>, vector<8x4xf32>, vector<8x4xf32> -> vector<8x4xf32>
    %79 = arith.negf %78 : vector<8x4xf32>
    %80 = math.exp %79 : vector<8x4xf32>
    %cst_41 = arith.constant 1.000000e+00 : f32
    %81 = vector.broadcast %cst_41 : f32 to vector<8x4xf32>
    %82 = arith.addf %81, %80 : vector<8x4xf32>
    %83 = arith.divf %81, %82 : vector<8x4xf32>
    %84 = arith.addf %43, %83 : vector<8x4xf32>
    %c0_42 = arith.constant 0 : index
    %c0_43 = arith.constant 0 : index
    %c0_44 = arith.constant 0 : index
    %85 = vector.load %arg13[%c0_42, %c0_43, %c0_44] : memref<3x4x32xf32, #tpu.memory_space<vmem>>, vector<1x4x32xf32>
    %86 = vector.shape_cast %85 : vector<1x4x32xf32> to vector<4x32xf32>
    %cst_45 = arith.constant dense<0.000000e+00> : vector<8x32xf32>
    %87 = tpu.matmul %1, %86, %cst_45 {dimension_numbers = #tpu.dot_dimension_numbers<[1], [0], [0], [1], [0, 0, 1, 1], [], []>} : vector<8x4xf32>, vector<4x32xf32>, vector<8x32xf32> -> vector<8x32xf32>
    %c0_46 = arith.constant 0 : index
    %c0_47 = arith.constant 0 : index
    %c0_48 = arith.constant 0 : index
    %88 = vector.load %arg14[%c0_46, %c0_47, %c0_48] : memref<3x4x32xf32, #tpu.memory_space<vmem>>, vector<1x4x32xf32>
    %89 = vector.shape_cast %88 : vector<1x4x32xf32> to vector<4x32xf32>
    %cst_49 = arith.constant dense<0.000000e+00> : vector<8x32xf32>
    %90 = tpu.matmul %84, %89, %cst_49 {dimension_numbers = #tpu.dot_dimension_numbers<[1], [0], [0], [1], [0, 0, 1, 1], [], []>} : vector<8x4xf32>, vector<4x32xf32>, vector<8x32xf32> -> vector<8x32xf32>
    %91 = arith.addf %87, %90 : vector<8x32xf32>
    %c1 = arith.constant 1 : index
    %c0_50 = arith.constant 0 : index
    %c0_51 = arith.constant 0 : index
    %92 = vector.load %arg13[%c1, %c0_50, %c0_51] : memref<3x4x32xf32, #tpu.memory_space<vmem>>, vector<1x4x32xf32>
    %93 = vector.shape_cast %92 : vector<1x4x32xf32> to vector<4x32xf32>
    %cst_52 = arith.constant dense<0.000000e+00> : vector<8x32xf32>
    %94 = tpu.matmul %1, %93, %cst_52 {dimension_numbers = #tpu.dot_dimension_numbers<[1], [0], [0], [1], [0, 0, 1, 1], [], []>} : vector<8x4xf32>, vector<4x32xf32>, vector<8x32xf32> -> vector<8x32xf32>
    %c1_53 = arith.constant 1 : index
    %c0_54 = arith.constant 0 : index
    %c0_55 = arith.constant 0 : index
    %95 = vector.load %arg14[%c1_53, %c0_54, %c0_55] : memref<3x4x32xf32, #tpu.memory_space<vmem>>, vector<1x4x32xf32>
    %96 = vector.shape_cast %95 : vector<1x4x32xf32> to vector<4x32xf32>
    %cst_56 = arith.constant dense<0.000000e+00> : vector<8x32xf32>
    %97 = tpu.matmul %84, %96, %cst_56 {dimension_numbers = #tpu.dot_dimension_numbers<[1], [0], [0], [1], [0, 0, 1, 1], [], []>} : vector<8x4xf32>, vector<4x32xf32>, vector<8x32xf32> -> vector<8x32xf32>
    %98 = arith.addf %94, %97 : vector<8x32xf32>
    %c2 = arith.constant 2 : index
    %c0_57 = arith.constant 0 : index
    %c0_58 = arith.constant 0 : index
    %99 = vector.load %arg13[%c2, %c0_57, %c0_58] : memref<3x4x32xf32, #tpu.memory_space<vmem>>, vector<1x4x32xf32>
    %100 = vector.shape_cast %99 : vector<1x4x32xf32> to vector<4x32xf32>
    %cst_59 = arith.constant dense<0.000000e+00> : vector<8x32xf32>
    %101 = tpu.matmul %1, %100, %cst_59 {dimension_numbers = #tpu.dot_dimension_numbers<[1], [0], [0], [1], [0, 0, 1, 1], [], []>} : vector<8x4xf32>, vector<4x32xf32>, vector<8x32xf32> -> vector<8x32xf32>
    %c2_60 = arith.constant 2 : index
    %c0_61 = arith.constant 0 : index
    %c0_62 = arith.constant 0 : index
    %102 = vector.load %arg14[%c2_60, %c0_61, %c0_62] : memref<3x4x32xf32, #tpu.memory_space<vmem>>, vector<1x4x32xf32>
    %103 = vector.shape_cast %102 : vector<1x4x32xf32> to vector<4x32xf32>
    %cst_63 = arith.constant dense<0.000000e+00> : vector<8x32xf32>
    %104 = tpu.matmul %84, %103, %cst_63 {dimension_numbers = #tpu.dot_dimension_numbers<[1], [0], [0], [1], [0, 0, 1, 1], [], []>} : vector<8x4xf32>, vector<4x32xf32>, vector<8x32xf32> -> vector<8x32xf32>
    %105 = arith.addf %101, %104 : vector<8x32xf32>
    %c0_64 = arith.constant 0 : index
    %c0_65 = arith.constant 0 : index
    %106 = vector.load %arg15[%c0_64, %c0_65] : memref<8x8xf32, #tpu.memory_space<vmem>>, vector<8x8xf32>
    %cst_66 = arith.constant dense<0.000000e+00> : vector<8x32xf32>
    %107 = tpu.matmul %106, %91, %cst_66 {dimension_numbers = #tpu.dot_dimension_numbers<[1], [0], [0], [1], [0, 0, 1, 1], [], []>} : vector<8x8xf32>, vector<8x32xf32>, vector<8x32xf32> -> vector<8x32xf32>
    %108 = arith.addf %107, %98 : vector<8x32xf32>
    %c0_67 = arith.constant 0 : index
    %c0_68 = arith.constant 0 : index
    %109 = vector.load %arg16[%c0_67, %c0_68] : memref<8x8xf32, #tpu.memory_space<vmem>>, vector<8x8xf32>
    %cst_69 = arith.constant dense<0.000000e+00> : vector<8x32xf32>
    %110 = tpu.matmul %109, %105, %cst_69 {dimension_numbers = #tpu.dot_dimension_numbers<[1], [0], [0], [1], [0, 0, 1, 1], [], []>} : vector<8x8xf32>, vector<8x32xf32>, vector<8x32xf32> -> vector<8x32xf32>
    %111 = arith.addf %108, %110 : vector<8x32xf32>
    %c0_70 = arith.constant 0 : index
    %c0_71 = arith.constant 0 : index
    %c0_72 = arith.constant 0 : index
    %112 = vector.load %arg17[%c0_70, %c0_71, %c0_72] : memref<1x8x32xf32, #tpu.memory_space<vmem>>, vector<1x8x32xf32>
    %113 = vector.shape_cast %112 : vector<1x8x32xf32> to vector<8x32xf32>
    %114 = vector.shape_cast %111 : vector<8x32xf32> to vector<1x8x32xf32>
    tpu.vector_store %arg17[%c0_70, %c0_71, %c0_72], %114 {strides = array<i32>} : memref<1x8x32xf32, #tpu.memory_space<vmem>>, vector<1x8x32xf32>,
    return
  }
  func.func @transform_0(%arg0: i32) -> (i32, i32, i32) {
    %c0_i32 = arith.constant 0 : i32
    %c0_i32_0 = arith.constant 0 : i32
    %c0_i32_1 = arith.constant 0 : i32
    return %arg0, %c0_i32, %c0_i32_0 : i32, i32, i32
  }
  func.func @transform_1(%arg0: i32) -> (i32, i32, i32) {
    %c0_i32 = arith.constant 0 : i32
    %c0_i32_0 = arith.constant 0 : i32
    %c0_i32_1 = arith.constant 0 : i32
    return %arg0, %c0_i32, %c0_i32_0 : i32, i32, i32
  }
  func.func @transform_2(%arg0: i32) -> (i32, i32) {
    %c0_i32 = arith.constant 0 : i32
    %c0_i32_0 = arith.constant 0 : i32
    %c0_i32_1 = arith.constant 0 : i32
    return %c0_i32, %c0_i32_0 : i32, i32
  }
  func.func @transform_3(%arg0: i32) -> (i32, i32) {
    %c0_i32 = arith.constant 0 : i32
    %c0_i32_0 = arith.constant 0 : i32
    %c0_i32_1 = arith.constant 0 : i32
    return %c0_i32, %c0_i32_0 : i32, i32
  }
  func.func @transform_4(%arg0: i32) -> (i32, i32) {
    %c0_i32 = arith.constant 0 : i32
    %c0_i32_0 = arith.constant 0 : i32
    %c0_i32_1 = arith.constant 0 : i32
    return %c0_i32, %c0_i32_0 : i32, i32
  }
  func.func @transform_5(%arg0: i32) -> (i32, i32) {
    %c0_i32 = arith.constant 0 : i32
    %c0_i32_0 = arith.constant 0 : i32
    %c0_i32_1 = arith.constant 0 : i32
    return %c0_i32, %c0_i32_0 : i32, i32
  }
  func.func @transform_6(%arg0: i32) -> (i32, i32) {
    %c0_i32 = arith.constant 0 : i32
    %c0_i32_0 = arith.constant 0 : i32
    %c0_i32_1 = arith.constant 0 : i32
    return %c0_i32, %c0_i32_0 : i32, i32
  }
  func.func @transform_7(%arg0: i32) -> (i32, i32) {
    %c0_i32 = arith.constant 0 : i32
    %c0_i32_0 = arith.constant 0 : i32
    %c0_i32_1 = arith.constant 0 : i32
    return %c0_i32, %c0_i32_0 : i32, i32
  }
  func.func @transform_8(%arg0: i32) -> (i32, i32) {
    %c0_i32 = arith.constant 0 : i32
    %c0_i32_0 = arith.constant 0 : i32
    %c0_i32_1 = arith.constant 0 : i32
    return %c0_i32, %c0_i32_0 : i32, i32
  }
  func.func @transform_9(%arg0: i32) -> (i32, i32) {
    %c0_i32 = arith.constant 0 : i32
    %c0_i32_0 = arith.constant 0 : i32
    %c0_i32_1 = arith.constant 0 : i32
    return %c0_i32, %c0_i32_0 : i32, i32
  }
  func.func @transform_10(%arg0: i32) -> (i32, i32) {
    %c0_i32 = arith.constant 0 : i32
    %c0_i32_0 = arith.constant 0 : i32
    %c0_i32_1 = arith.constant 0 : i32
    return %c0_i32, %c0_i32_0 : i32, i32
  }
  func.func @transform_11(%arg0: i32) -> (i32, i32) {
    %c0_i32 = arith.constant 0 : i32
    %c0_i32_0 = arith.constant 0 : i32
    %c0_i32_1 = arith.constant 0 : i32
    return %c0_i32, %c0_i32_0 : i32, i32
  }
  func.func @transform_12(%arg0: i32) -> (i32, i32, i32) {
    %c0_i32 = arith.constant 0 : i32
    %c0_i32_0 = arith.constant 0 : i32
    %c0_i32_1 = arith.constant 0 : i32
    %c0_i32_2 = arith.constant 0 : i32
    return %c0_i32, %c0_i32_0, %c0_i32_1 : i32, i32, i32
  }
  func.func @transform_13(%arg0: i32) -> (i32, i32, i32) {
    %c0_i32 = arith.constant 0 : i32
    %c0_i32_0 = arith.constant 0 : i32
    %c0_i32_1 = arith.constant 0 : i32
    %c0_i32_2 = arith.constant 0 : i32
    return %c0_i32, %c0_i32_0, %c0_i32_1 : i32, i32, i32
  }
  func.func @transform_14(%arg0: i32) -> (i32, i32) {
    %c0_i32 = arith.constant 0 : i32
    %c0_i32_0 = arith.constant 0 : i32
    %c0_i32_1 = arith.constant 0 : i32
    return %c0_i32, %c0_i32_0 : i32, i32
  }
  func.func @transform_15(%arg0: i32) -> (i32, i32) {
    %c0_i32 = arith.constant 0 : i32
    %c0_i32_0 = arith.constant 0 : i32
    %c0_i32_1 = arith.constant 0 : i32
    return %c0_i32, %c0_i32_0 : i32, i32
  }
  func.func @transform_16(%arg0: i32) -> (i32, i32, i32) {
    %c0_i32 = arith.constant 0 : i32
    %c0_i32_0 = arith.constant 0 : i32
    %c0_i32_1 = arith.constant 0 : i32
    return %arg0, %c0_i32, %c0_i32_0 : i32, i32, i32
  }
}

</mosaic_0001>

<llo_original>
// kernel: data_embedding_forward.1
$region0: #{data_embedding_forward.1}
  #allocation0 [shape = 'u32[]', space=smem, size = 0x4, offset = 0x4, fixed_abs, tag = 'smem constant byte address 0x4 - core index']
  #allocation1 [shape = 'u32[144,128]{1,0:T(1,128)}', space=vmem, size = 0x12000, scoped, tag = 'internal scratch']
  %s0 = inlined_call_operand.vmem [shape: f32[2,8,4], index: 0, kind: input, shape index: {}]
  %s1 = inlined_call_operand.vmem [shape: f32[2,4,8], index: 1, kind: input, shape index: {}]
  %s2 = inlined_call_operand.vmem [shape: f32[8,64], index: 2, kind: input, shape index: {}]
  %s3 = inlined_call_operand.vmem [shape: f32[8,64], index: 3, kind: input, shape index: {}]
  %s4 = inlined_call_operand.vmem [shape: f32[1,64], index: 4, kind: input, shape index: {}]
  %s5 = inlined_call_operand.vmem [shape: f32[1,64], index: 5, kind: input, shape index: {}]
  %s6 = inlined_call_operand.hbm [shape: f32[4,4], index: 6, kind: input, shape index: {}]
  %s7 = inlined_call_operand.vmem [shape: f32[4,64], index: 7, kind: input, shape index: {}]
  %s8 = inlined_call_operand.vmem [shape: f32[4,64], index: 8, kind: input, shape index: {}]
  %s9 = inlined_call_operand.hbm [shape: f32[1,64], index: 9, kind: input, shape index: {}]
  %s10 = inlined_call_operand.hbm [shape: f32[1,64], index: 10, kind: input, shape index: {}]
  %s11 = inlined_call_operand.hbm [shape: f32[8,8], index: 11, kind: input, shape index: {}]
  %s12 = inlined_call_operand.vmem [shape: f32[3,4,32], index: 12, kind: input, shape index: {}]
  %s13 = inlined_call_operand.vmem [shape: f32[3,4,32], index: 13, kind: input, shape index: {}]
  %s14 = inlined_call_operand.hbm [shape: f32[8,8], index: 14, kind: input, shape index: {}]
  %s15 = inlined_call_operand.hbm [shape: f32[8,8], index: 15, kind: input, shape index: {}]
  %s16 = inlined_call_operand.hbm [shape: f32[2,8,32], index: 16, kind: output, shape index: {}]
  %s17 = sld [smem:[#allocation0]]
  $region121: #{data_embedding_forward.1} parent=0
    _
  %s19 = ssub.s32 1, %s17
  %s20 = scalar_select 0, %s19, %s17
  $region1: #{data_embedding_forward.1} parent=0
    #allocation2 [shape = 'u8[2048]{0}', space=vmem, size = 0x800, scoped, tag = 'input window, operand 6, single buffered']
    #allocation3 [shape = 's32[2]{0}', space=sflag, size = 0x8, scoped, tag = 'scoped memory for data_embedding_forward.1']
    #allocation4 [shape = 's32[2]{0}', space=sflag, size = 0x8, scoped, tag = 'scoped memory for data_embedding_forward.1']
    #allocation5 [shape = 'u8[512]{0}', space=vmem, size = 0x400, scoped, tag = 'input window, operand 9, single buffered']
    #allocation6 [shape = 's32[1]{0}', space=sflag, size = 0x4, scoped, tag = 'scoped memory for data_embedding_forward.1']
    #allocation7 [shape = 'u8[512]{0}', space=vmem, size = 0x400, scoped, tag = 'input window, operand 10, single buffered']
    #allocation8 [shape = 'u8[4096]{0}', space=vmem, size = 0x1000, scoped, tag = 'input window, operand 11, single buffered']
    #allocation9 [shape = 's32[1]{0}', space=sflag, size = 0x4, scoped, tag = 'scoped memory for data_embedding_forward.1']
    #allocation10 [shape = 'u8[4096]{0}', space=vmem, size = 0x1000, scoped, tag = 'input window, operand 14, single buffered']
    #allocation11 [shape = 'u8[4096]{0}', space=vmem, size = 0x1000, scoped, tag = 'input window, operand 15, single buffered']
    #allocation12 [shape = 's32[1]{0}', space=sflag, size = 0x4, scoped, tag = 'scoped memory for data_embedding_forward.1']
    #allocation13 [shape = 'u8[8192]{0}', space=vmem, size = 0x2000, scoped, tag = 'output window, operand 0']
    %21 = vsyncpa [#allocation3], 0
    %22 = vsyncpa [#allocation6], 0
    %23 = vsyncpa [#allocation9], 0
    %24 = vsyncpa [#allocation12], 0
    %25 = vsyncpa [#allocation4], 0
    %s26 = scalar_lea.sflag [#allocation4], 1
    %27 = vsyncpa %s26, 0
    loop: start=0, step=1, limit=4
    $region2: #{data_embedding_forward.1} parent=1 // loop_pre_header
      _
    $region3: #{data_embedding_forward.1} parent=1 // loop_header
      %s29 = sphi 0, %s33
      %p30 = scmp.ge.s32.totalorder %s29, 4
      %s39 = sphi 0, %s41
      %s42 = sphi 0, %s39
      %s43 = sphi 0, %s42
      %s59 = sphi 0, %s43
      %s65 = sphi 0, %s67
      %s68 = sphi 0, %s65
      %s69 = sphi 0, %s68
      %s85 = sphi 0, %s69
      %s89 = sphi 0, %s89
      %s91 = sphi 0, %s89
      %s92 = sphi 0, %s91
      %s106 = sphi 0, %s92
      %s110 = sphi 0, %s110
      %s112 = sphi 0, %s110
      %s113 = sphi 0, %s112
      %s127 = sphi 0, %s113
      %s131 = sphi 0, %s131
      %s133 = sphi 0, %s131
      %s134 = sphi 0, %s133
      %s148 = sphi 0, %s134
      %s152 = sphi 0, %s152
      %s154 = sphi 0, %s152
      %s155 = sphi 0, %s154
      %s169 = sphi 0, %s155
      %s173 = sphi 0, %s173
      %s175 = sphi 0, %s173
      %s176 = sphi 0, %s175
      %s190 = sphi 0, %s176
      %s194 = sphi 0, %s194
      %s196 = sphi 0, %s194
      %s197 = sphi 0, %s196
      %s211 = sphi 0, %s197
      %s215 = sphi 0, %s215
      %s217 = sphi 0, %s215
      %s218 = sphi 0, %s217
      %s232 = sphi 0, %s218
      %s236 = sphi 0, %s236
      %s238 = sphi 0, %s236
      %s239 = sphi 0, %s238
      %s253 = sphi 0, %s239
      %s257 = sphi 0, %s257
      %s259 = sphi 0, %s257
      %s260 = sphi 0, %s259
      %s274 = sphi 0, %s260
      %s278 = sphi 0, %s278
      %s280 = sphi 0, %s278
      %s281 = sphi 0, %s280
      %s295 = sphi 0, %s281
      %s299 = sphi 0, %s299
      %s301 = sphi 0, %s299
      %s302 = sphi 0, %s301
      %s316 = sphi 0, %s302
      %s320 = sphi 0, %s320
      %s322 = sphi 0, %s320
      %s323 = sphi 0, %s322
      %s337 = sphi 0, %s323
      %s341 = sphi 0, %s341
      %s343 = sphi 0, %s341
      %s344 = sphi 0, %s343
      %s358 = sphi 0, %s344
      %s362 = sphi 0, %s362
      %s364 = sphi 0, %s362
      %s365 = sphi 0, %s364
      %s379 = sphi 0, %s365
      %s385 = sphi 0, %s387
      %s388 = sphi 0, %s385
      %s389 = sphi 0, %s388
      %s405 = sphi 0, %s389
    $region4: #{data_embedding_forward.1} parent=1 // loop_header_branch
      %32 = sbr.rel (%p30) target = $region8
    $region5: #{data_embedding_forward.1} parent=1 // loop_body
      %s34 = ssub.s32 %s29, 1
      %s35 = ssub.s32 %s29, 2
      %s36 = sadd.s32 %s29, 1
      %s37 = ssub.s32 %s29, %s36
      %p38 = scmp.eq.s32.totalorder %s37, 0
      %s40 = sadd.s32 %s39, 1
      %s41 = scalar_select %p38, %s39, %s40
      %p44 = pneg %p38
      %p45 = scmp.eq.s32.totalorder %s29, 1
      %p46 = por %p44, %p45
      %p47 = scmp.ne.s32.totalorder %s39, %s42
      %p48 = scmp.eq.s32.totalorder %s29, 0
      %p49 = por %p47, %p48
      %p50 = scmp.ne.s32.totalorder %s39, %s42
      %p51 = scmp.eq.s32.totalorder %s34, 1
      %p52 = por %p50, %p51
      %p53 = scmp.ne.s32.totalorder %s42, %s43
      %p54 = scmp.eq.s32.totalorder %s34, 0
      %p55 = por %p53, %p54
      %p56 = scmp.ne.s32.totalorder %s42, %s43
      %p57 = scmp.eq.s32.totalorder %s35, 1
      %p58 = por %p56, %p57
      %p60 = scmp.ne.s32.totalorder %s43, %s59
      %p61 = scmp.eq.s32.totalorder %s35, 0
      %p62 = por %p60, %p61
      %s63 = ssub.s32 %s29, %s36
      %p64 = scmp.eq.s32.totalorder %s63, 0
      %s66 = sadd.s32 %s65, 1
      %s67 = scalar_select %p64, %s65, %s66
      %p70 = pneg %p64
      %p71 = scmp.eq.s32.totalorder %s29, 1
      %p72 = por %p70, %p71
      %p73 = scmp.ne.s32.totalorder %s65, %s68
      %p74 = scmp.eq.s32.totalorder %s29, 0
      %p75 = por %p73, %p74
      %p76 = scmp.ne.s32.totalorder %s65, %s68
      %p77 = scmp.eq.s32.totalorder %s34, 1
      %p78 = por %p76, %p77
      %p79 = scmp.ne.s32.totalorder %s68, %s69
      %p80 = scmp.eq.s32.totalorder %s34, 0
      %p81 = por %p79, %p80
      %p82 = scmp.ne.s32.totalorder %s68, %s69
      %p83 = scmp.eq.s32.totalorder %s35, 1
      %p84 = por %p82, %p83
      %p86 = scmp.ne.s32.totalorder %s69, %s85
      %p87 = scmp.eq.s32.totalorder %s35, 0
      %p88 = por %p86, %p87
      %s90 = sadd.s32 %s89, 1
      %p93 = scmp.eq.s32.totalorder %s29, 1
      %p94 = scmp.ne.s32.totalorder %s89, %s91
      %p95 = scmp.eq.s32.totalorder %s29, 0
      %p96 = por %p94, %p95
      %p97 = scmp.ne.s32.totalorder %s89, %s91
      %p98 = scmp.eq.s32.totalorder %s34, 1
      %p99 = por %p97, %p98
      %p100 = scmp.ne.s32.totalorder %s91, %s92
      %p101 = scmp.eq.s32.totalorder %s34, 0
      %p102 = por %p100, %p101
      %p103 = scmp.ne.s32.totalorder %s91, %s92
      %p104 = scmp.eq.s32.totalorder %s35, 1
      %p105 = por %p103, %p104
      %p107 = scmp.ne.s32.totalorder %s92, %s106
      %p108 = scmp.eq.s32.totalorder %s35, 0
      %p109 = por %p107, %p108
      %s111 = sadd.s32 %s110, 1
      %p114 = scmp.eq.s32.totalorder %s29, 1
      %p115 = scmp.ne.s32.totalorder %s110, %s112
      %p116 = scmp.eq.s32.totalorder %s29, 0
      %p117 = por %p115, %p116
      %p118 = scmp.ne.s32.totalorder %s110, %s112
      %p119 = scmp.eq.s32.totalorder %s34, 1
      %p120 = por %p118, %p119
      %p121 = scmp.ne.s32.totalorder %s112, %s113
      %p122 = scmp.eq.s32.totalorder %s34, 0
      %p123 = por %p121, %p122
      %p124 = scmp.ne.s32.totalorder %s112, %s113
      %p125 = scmp.eq.s32.totalorder %s35, 1
      %p126 = por %p124, %p125
      %p128 = scmp.ne.s32.totalorder %s113, %s127
      %p129 = scmp.eq.s32.totalorder %s35, 0
      %p130 = por %p128, %p129
      %s132 = sadd.s32 %s131, 1
      %p135 = scmp.eq.s32.totalorder %s29, 1
      %p136 = scmp.ne.s32.totalorder %s131, %s133
      %p137 = scmp.eq.s32.totalorder %s29, 0
      %p138 = por %p136, %p137
      %p139 = scmp.ne.s32.totalorder %s131, %s133
      %p140 = scmp.eq.s32.totalorder %s34, 1
      %p141 = por %p139, %p140
      %p142 = scmp.ne.s32.totalorder %s133, %s134
      %p143 = scmp.eq.s32.totalorder %s34, 0
      %p144 = por %p142, %p143
      %p145 = scmp.ne.s32.totalorder %s133, %s134
      %p146 = scmp.eq.s32.totalorder %s35, 1
      %p147 = por %p145, %p146
      %p149 = scmp.ne.s32.totalorder %s134, %s148
      %p150 = scmp.eq.s32.totalorder %s35, 0
      %p151 = por %p149, %p150
      %s153 = sadd.s32 %s152, 1
      %p156 = scmp.eq.s32.totalorder %s29, 1
      %p157 = scmp.ne.s32.totalorder %s152, %s154
      %p158 = scmp.eq.s32.totalorder %s29, 0
      %p159 = por %p157, %p158
      %p160 = scmp.ne.s32.totalorder %s152, %s154
      %p161 = scmp.eq.s32.totalorder %s34, 1
      %p162 = por %p160, %p161
      %p163 = scmp.ne.s32.totalorder %s154, %s155
      %p164 = scmp.eq.s32.totalorder %s34, 0
      %p165 = por %p163, %p164
      %p166 = scmp.ne.s32.totalorder %s154, %s155
      %p167 = scmp.eq.s32.totalorder %s35, 1
      %p168 = por %p166, %p167
      %p170 = scmp.ne.s32.totalorder %s155, %s169
      %p171 = scmp.eq.s32.totalorder %s35, 0
      %p172 = por %p170, %p171
      %s174 = sadd.s32 %s173, 1
      %p177 = scmp.eq.s32.totalorder %s29, 1
      %p178 = scmp.ne.s32.totalorder %s173, %s175
      %p179 = scmp.eq.s32.totalorder %s29, 0
      %p180 = por %p178, %p179
      %p181 = scmp.ne.s32.totalorder %s173, %s175
      %p182 = scmp.eq.s32.totalorder %s34, 1
      %p183 = por %p181, %p182
      %p184 = scmp.ne.s32.totalorder %s175, %s176
      %p185 = scmp.eq.s32.totalorder %s34, 0
      %p186 = por %p184, %p185
      %p187 = scmp.ne.s32.totalorder %s175, %s176
      %p188 = scmp.eq.s32.totalorder %s35, 1
      %p189 = por %p187, %p188
      %p191 = scmp.ne.s32.totalorder %s176, %s190
      %p192 = scmp.eq.s32.totalorder %s35, 0
      %p193 = por %p191, %p192
      %s195 = sadd.s32 %s194, 1
      %p198 = scmp.eq.s32.totalorder %s29, 1
      %p199 = scmp.ne.s32.totalorder %s194, %s196
      %p200 = scmp.eq.s32.totalorder %s29, 0
      %p201 = por %p199, %p200
      %p202 = scmp.ne.s32.totalorder %s194, %s196
      %p203 = scmp.eq.s32.totalorder %s34, 1
      %p204 = por %p202, %p203
      %p205 = scmp.ne.s32.totalorder %s196, %s197
      %p206 = scmp.eq.s32.totalorder %s34, 0
      %p207 = por %p205, %p206
      %p208 = scmp.ne.s32.totalorder %s196, %s197
      %p209 = scmp.eq.s32.totalorder %s35, 1
      %p210 = por %p208, %p209
      %p212 = scmp.ne.s32.totalorder %s197, %s211
      %p213 = scmp.eq.s32.totalorder %s35, 0
      %p214 = por %p212, %p213
      %s216 = sadd.s32 %s215, 1
      %p219 = scmp.eq.s32.totalorder %s29, 1
      %p220 = scmp.ne.s32.totalorder %s215, %s217
      %p221 = scmp.eq.s32.totalorder %s29, 0
      %p222 = por %p220, %p221
      %p223 = scmp.ne.s32.totalorder %s215, %s217
      %p224 = scmp.eq.s32.totalorder %s34, 1
      %p225 = por %p223, %p224
      %p226 = scmp.ne.s32.totalorder %s217, %s218
      %p227 = scmp.eq.s32.totalorder %s34, 0
      %p228 = por %p226, %p227
      %p229 = scmp.ne.s32.totalorder %s217, %s218
      %p230 = scmp.eq.s32.totalorder %s35, 1
      %p231 = por %p229, %p230
      %p233 = scmp.ne.s32.totalorder %s218, %s232
      %p234 = scmp.eq.s32.totalorder %s35, 0
      %p235 = por %p233, %p234
      %s237 = sadd.s32 %s236, 1
      %p240 = scmp.eq.s32.totalorder %s29, 1
      %p241 = scmp.ne.s32.totalorder %s236, %s238
      %p242 = scmp.eq.s32.totalorder %s29, 0
      %p243 = por %p241, %p242
      %p244 = scmp.ne.s32.totalorder %s236, %s238
      %p245 = scmp.eq.s32.totalorder %s34, 1
      %p246 = por %p244, %p245
      %p247 = scmp.ne.s32.totalorder %s238, %s239
      %p248 = scmp.eq.s32.totalorder %s34, 0
      %p249 = por %p247, %p248
      %p250 = scmp.ne.s32.totalorder %s238, %s239
      %p251 = scmp.eq.s32.totalorder %s35, 1
      %p252 = por %p250, %p251
      %p254 = scmp.ne.s32.totalorder %s239, %s253
      %p255 = scmp.eq.s32.totalorder %s35, 0
      %p256 = por %p254, %p255
      %s258 = sadd.s32 %s257, 1
      %p261 = scmp.eq.s32.totalorder %s29, 1
      %p262 = scmp.ne.s32.totalorder %s257, %s259
      %p263 = scmp.eq.s32.totalorder %s29, 0
      %p264 = por %p262, %p263
      %p265 = scmp.ne.s32.totalorder %s257, %s259
      %p266 = scmp.eq.s32.totalorder %s34, 1
      %p267 = por %p265, %p266
      %p268 = scmp.ne.s32.totalorder %s259, %s260
      %p269 = scmp.eq.s32.totalorder %s34, 0
      %p270 = por %p268, %p269
      %p271 = scmp.ne.s32.totalorder %s259, %s260
      %p272 = scmp.eq.s32.totalorder %s35, 1
      %p273 = por %p271, %p272
      %p275 = scmp.ne.s32.totalorder %s260, %s274
      %p276 = scmp.eq.s32.totalorder %s35, 0
      %p277 = por %p275, %p276
      %s279 = sadd.s32 %s278, 1
      %p282 = scmp.eq.s32.totalorder %s29, 1
      %p283 = scmp.ne.s32.totalorder %s278, %s280
      %p284 = scmp.eq.s32.totalorder %s29, 0
      %p285 = por %p283, %p284
      %p286 = scmp.ne.s32.totalorder %s278, %s280
      %p287 = scmp.eq.s32.totalorder %s34, 1
      %p288 = por %p286, %p287
      %p289 = scmp.ne.s32.totalorder %s280, %s281
      %p290 = scmp.eq.s32.totalorder %s34, 0
      %p291 = por %p289, %p290
      %p292 = scmp.ne.s32.totalorder %s280, %s281
      %p293 = scmp.eq.s32.totalorder %s35, 1
      %p294 = por %p292, %p293
      %p296 = scmp.ne.s32.totalorder %s281, %s295
      %p297 = scmp.eq.s32.totalorder %s35, 0
      %p298 = por %p296, %p297
      %s300 = sadd.s32 %s299, 1
      %p303 = scmp.eq.s32.totalorder %s29, 1
      %p304 = scmp.ne.s32.totalorder %s299, %s301
      %p305 = scmp.eq.s32.totalorder %s29, 0
      %p306 = por %p304, %p305
      %p307 = scmp.ne.s32.totalorder %s299, %s301
      %p308 = scmp.eq.s32.totalorder %s34, 1
      %p309 = por %p307, %p308
      %p310 = scmp.ne.s32.totalorder %s301, %s302
      %p311 = scmp.eq.s32.totalorder %s34, 0
      %p312 = por %p310, %p311
      %p313 = scmp.ne.s32.totalorder %s301, %s302
      %p314 = scmp.eq.s32.totalorder %s35, 1
      %p315 = por %p313, %p314
      %p317 = scmp.ne.s32.totalorder %s302, %s316
      %p318 = scmp.eq.s32.totalorder %s35, 0
      %p319 = por %p317, %p318
      %s321 = sadd.s32 %s320, 1
      %p324 = scmp.eq.s32.totalorder %s29, 1
      %p325 = scmp.ne.s32.totalorder %s320, %s322
      %p326 = scmp.eq.s32.totalorder %s29, 0
      %p327 = por %p325, %p326
      %p328 = scmp.ne.s32.totalorder %s320, %s322
      %p329 = scmp.eq.s32.totalorder %s34, 1
      %p330 = por %p328, %p329
      %p331 = scmp.ne.s32.totalorder %s322, %s323
      %p332 = scmp.eq.s32.totalorder %s34, 0
      %p333 = por %p331, %p332
      %p334 = scmp.ne.s32.totalorder %s322, %s323
      %p335 = scmp.eq.s32.totalorder %s35, 1
      %p336 = por %p334, %p335
      %p338 = scmp.ne.s32.totalorder %s323, %s337
      %p339 = scmp.eq.s32.totalorder %s35, 0
      %p340 = por %p338, %p339
      %s342 = sadd.s32 %s341, 1
      %p345 = scmp.eq.s32.totalorder %s29, 1
      %p346 = scmp.ne.s32.totalorder %s341, %s343
      %p347 = scmp.eq.s32.totalorder %s29, 0
      %p348 = por %p346, %p347
      %p349 = scmp.ne.s32.totalorder %s341, %s343
      %p350 = scmp.eq.s32.totalorder %s34, 1
      %p351 = por %p349, %p350
      %p352 = scmp.ne.s32.totalorder %s343, %s344
      %p353 = scmp.eq.s32.totalorder %s34, 0
      %p354 = por %p352, %p353
      %p355 = scmp.ne.s32.totalorder %s343, %s344
      %p356 = scmp.eq.s32.totalorder %s35, 1
      %p357 = por %p355, %p356
      %p359 = scmp.ne.s32.totalorder %s344, %s358
      %p360 = scmp.eq.s32.totalorder %s35, 0
      %p361 = por %p359, %p360
      %s363 = sadd.s32 %s362, 1
      %p366 = scmp.eq.s32.totalorder %s29, 1
      %p367 = scmp.ne.s32.totalorder %s362, %s364
      %p368 = scmp.eq.s32.totalorder %s29, 0
      %p369 = por %p367, %p368
      %p370 = scmp.ne.s32.totalorder %s362, %s364
      %p371 = scmp.eq.s32.totalorder %s34, 1
      %p372 = por %p370, %p371
      %p373 = scmp.ne.s32.totalorder %s364, %s365
      %p374 = scmp.eq.s32.totalorder %s34, 0
      %p375 = por %p373, %p374
      %p376 = scmp.ne.s32.totalorder %s364, %s365
      %p377 = scmp.eq.s32.totalorder %s35, 1
      %p378 = por %p376, %p377
      %p380 = scmp.ne.s32.totalorder %s365, %s379
      %p381 = scmp.eq.s32.totalorder %s35, 0
      %p382 = por %p380, %p381
      %s383 = ssub.s32 %s29, %s36
      %p384 = scmp.eq.s32.totalorder %s383, 0
      %s386 = sadd.s32 %s385, 1
      %s387 = scalar_select %p384, %s385, %s386
      %p390 = pneg %p384
      %p391 = scmp.eq.s32.totalorder %s29, 1
      %p392 = por %p390, %p391
      %p393 = scmp.ne.s32.totalorder %s385, %s388
      %p394 = scmp.eq.s32.totalorder %s29, 0
      %p395 = por %p393, %p394
      %p396 = scmp.ne.s32.totalorder %s385, %s388
      %p397 = scmp.eq.s32.totalorder %s34, 1
      %p398 = por %p396, %p397
      %p399 = scmp.ne.s32.totalorder %s388, %s389
      %p400 = scmp.eq.s32.totalorder %s34, 0
      %p401 = por %p399, %p400
      %p402 = scmp.ne.s32.totalorder %s388, %s389
      %p403 = scmp.eq.s32.totalorder %s35, 1
      %p404 = por %p402, %p403
      %p406 = scmp.ne.s32.totalorder %s389, %s405
      %p407 = scmp.eq.s32.totalorder %s35, 0
      %p408 = por %p406, %p407
      %p409 = scmp.le.s32.totalorder 1, %s29
      %p410 = scmp.lt.s32.totalorder %s29, 3
      %p411 = pnand %p409, %p410
      %p412 = pneg %p411
      // Predicated region
      $region9: #{data_embedding_forward.1} parent=5 // pred_check
        _
      $region10: #{data_embedding_forward.1} parent=5 // pred_check_branch
        %414 = sbr.rel (%p411) target = $region12
      $region11: #{data_embedding_forward.1} parent=5 // pred_region
        %s415 = ssub.s32 %s29, 1
        // Predicated region
        $region13: #{data_embedding_forward.1} parent=11 // pred_check
          %p416 = pneg %p102
        $region14: #{data_embedding_forward.1} parent=11 // pred_check_branch
          %418 = sbr.rel (%p416) target = $region16
        $region15: #{data_embedding_forward.1} parent=11 // pred_region
          _
        $region16: #{data_embedding_forward.1} parent=11 // pred_fallthru
          _
        // Predicated region
        $region17: #{data_embedding_forward.1} parent=11 // pred_check
          %p419 = pneg %p123
        $region18: #{data_embedding_forward.1} parent=11 // pred_check_branch
          %421 = sbr.rel (%p419) target = $region20
        $region19: #{data_embedding_forward.1} parent=11 // pred_region
          _
        $region20: #{data_embedding_forward.1} parent=11 // pred_fallthru
          _
        // Predicated region
        $region21: #{data_embedding_forward.1} parent=11 // pred_check
          %p422 = pneg %p144
        $region22: #{data_embedding_forward.1} parent=11 // pred_check_branch
          %424 = sbr.rel (%p422) target = $region24
        $region23: #{data_embedding_forward.1} parent=11 // pred_region
          _
        $region24: #{data_embedding_forward.1} parent=11 // pred_fallthru
          _
        // Predicated region
        $region25: #{data_embedding_forward.1} parent=11 // pred_check
          %p425 = pneg %p165
        $region26: #{data_embedding_forward.1} parent=11 // pred_check_branch
          %427 = sbr.rel (%p425) target = $region28
        $region27: #{data_embedding_forward.1} parent=11 // pred_region
          _
        $region28: #{data_embedding_forward.1} parent=11 // pred_fallthru
          _
        // Predicated region
        $region29: #{data_embedding_forward.1} parent=11 // pred_check
          %p428 = pneg %p186
        $region30: #{data_embedding_forward.1} parent=11 // pred_check_branch
          %430 = sbr.rel (%p428) target = $region32
        $region31: #{data_embedding_forward.1} parent=11 // pred_region
          %s432 = ssub.s32 64, 64
          %433 = vsyncadd [#allocation3], %s432
          %s435 = sshll.u32 [#allocation2], 4
          %s436 = int_to_ptr.vmem [resolvable:$true] %s435
          %438 = dma.hbm_to_vmem [thread:$0]  %s6, 64, %s436, [#allocation3]
        $region32: #{data_embedding_forward.1} parent=11 // pred_fallthru
          _
        // Predicated region
        $region33: #{data_embedding_forward.1} parent=11 // pred_check
          %p439 = pneg %p207
        $region34: #{data_embedding_forward.1} parent=11 // pred_check_branch
          %441 = sbr.rel (%p439) target = $region36
        $region35: #{data_embedding_forward.1} parent=11 // pred_region
          _
        $region36: #{data_embedding_forward.1} parent=11 // pred_fallthru
          _
        // Predicated region
        $region37: #{data_embedding_forward.1} parent=11 // pred_check
          %p442 = pneg %p228
        $region38: #{data_embedding_forward.1} parent=11 // pred_check_branch
          %444 = sbr.rel (%p442) target = $region40
        $region39: #{data_embedding_forward.1} parent=11 // pred_region
          _
        $region40: #{data_embedding_forward.1} parent=11 // pred_fallthru
          _
        // Predicated region
        $region41: #{data_embedding_forward.1} parent=11 // pred_check
          %p445 = pneg %p249
        $region42: #{data_embedding_forward.1} parent=11 // pred_check_branch
          %447 = sbr.rel (%p445) target = $region44
        $region43: #{data_embedding_forward.1} parent=11 // pred_region
          %s449 = ssub.s32 16, 16
          %450 = vsyncadd [#allocation6], %s449
          %s452 = sshll.u32 [#allocation5], 4
          %s453 = int_to_ptr.vmem [resolvable:$true] %s452
          %455 = dma.hbm_to_vmem [thread:$0]  %s9, 16, %s453, [#allocation6]
        $region44: #{data_embedding_forward.1} parent=11 // pred_fallthru
          _
        // Predicated region
        $region45: #{data_embedding_forward.1} parent=11 // pred_check
          %p456 = pneg %p270
        $region46: #{data_embedding_forward.1} parent=11 // pred_check_branch
          %458 = sbr.rel (%p456) target = $region48
        $region47: #{data_embedding_forward.1} parent=11 // pred_region
          %s460 = ssub.s32 16, 16
          %461 = vsyncadd [#allocation6], %s460
          %s463 = sshll.u32 [#allocation7], 4
          %s464 = int_to_ptr.vmem [resolvable:$true] %s463
          %466 = dma.hbm_to_vmem [thread:$0]  %s10, 16, %s464, [#allocation6]
        $region48: #{data_embedding_forward.1} parent=11 // pred_fallthru
          _
        // Predicated region
        $region49: #{data_embedding_forward.1} parent=11 // pred_check
          %p467 = pneg %p291
        $region50: #{data_embedding_forward.1} parent=11 // pred_check_branch
          %469 = sbr.rel (%p467) target = $region52
        $region51: #{data_embedding_forward.1} parent=11 // pred_region
          %s471 = ssub.s32 128, 128
          %472 = vsyncadd [#allocation9], %s471
          %s474 = sshll.u32 [#allocation8], 4
          %s475 = int_to_ptr.vmem [resolvable:$true] %s474
          %477 = dma.hbm_to_vmem [thread:$0]  %s11, 128, %s475, [#allocation9]
        $region52: #{data_embedding_forward.1} parent=11 // pred_fallthru
          _
        // Predicated region
        $region53: #{data_embedding_forward.1} parent=11 // pred_check
          %p478 = pneg %p312
        $region54: #{data_embedding_forward.1} parent=11 // pred_check_branch
          %480 = sbr.rel (%p478) target = $region56
        $region55: #{data_embedding_forward.1} parent=11 // pred_region
          _
        $region56: #{data_embedding_forward.1} parent=11 // pred_fallthru
          _
        // Predicated region
        $region57: #{data_embedding_forward.1} parent=11 // pred_check
          %p481 = pneg %p333
        $region58: #{data_embedding_forward.1} parent=11 // pred_check_branch
          %483 = sbr.rel (%p481) target = $region60
        $region59: #{data_embedding_forward.1} parent=11 // pred_region
          _
        $region60: #{data_embedding_forward.1} parent=11 // pred_fallthru
          _
        // Predicated region
        $region61: #{data_embedding_forward.1} parent=11 // pred_check
          %p484 = pneg %p354
        $region62: #{data_embedding_forward.1} parent=11 // pred_check_branch
          %486 = sbr.rel (%p484) target = $region64
        $region63: #{data_embedding_forward.1} parent=11 // pred_region
          %s488 = ssub.s32 128, 128
          %489 = vsyncadd [#allocation9], %s488
          %s491 = sshll.u32 [#allocation10], 4
          %s492 = int_to_ptr.vmem [resolvable:$true] %s491
          %494 = dma.hbm_to_vmem [thread:$0]  %s14, 128, %s492, [#allocation9]
        $region64: #{data_embedding_forward.1} parent=11 // pred_fallthru
          _
        // Predicated region
        $region65: #{data_embedding_forward.1} parent=11 // pred_check
          %p495 = pneg %p375
        $region66: #{data_embedding_forward.1} parent=11 // pred_check_branch
          %497 = sbr.rel (%p495) target = $region68
        $region67: #{data_embedding_forward.1} parent=11 // pred_region
          %s499 = ssub.s32 128, 128
          %500 = vsyncadd [#allocation12], %s499
          %s502 = sshll.u32 [#allocation11], 4
          %s503 = int_to_ptr.vmem [resolvable:$true] %s502
          %505 = dma.hbm_to_vmem [thread:$0]  %s15, 128, %s503, [#allocation12]
        $region68: #{data_embedding_forward.1} parent=11 // pred_fallthru
          _
      $region12: #{data_embedding_forward.1} parent=5 // pred_fallthru
        _
      %p506 = scmp.lt.s32.totalorder %s29, 2
      // Predicated region
      $region69: #{data_embedding_forward.1} parent=5 // pred_check
        %p507 = pneg %p506
      $region70: #{data_embedding_forward.1} parent=5 // pred_check_branch
        %509 = sbr.rel (%p507) target = $region72
      $region71: #{data_embedding_forward.1} parent=5 // pred_region
        // Predicated region
        $region73: #{data_embedding_forward.1} parent=71 // pred_check
          %p510 = pneg %p49
        $region74: #{data_embedding_forward.1} parent=71 // pred_check_branch
          %512 = sbr.rel (%p510) target = $region76
        $region75: #{data_embedding_forward.1} parent=71 // pred_region
          %p513 = scmp.lt.s32.totalorder %s29, 1
          %s514 = scalar_select %p513, %s29, 1
          %s515 = smul.addr %s514, 8
          %s516 = scalar_lea.vmem %s0, %s515
        $region76: #{data_embedding_forward.1} parent=71 // pred_fallthru
          _
        // Predicated region
        $region77: #{data_embedding_forward.1} parent=71 // pred_check
          %p517 = pneg %p75
        $region78: #{data_embedding_forward.1} parent=71 // pred_check_branch
          %519 = sbr.rel (%p517) target = $region80
        $region79: #{data_embedding_forward.1} parent=71 // pred_region
          %p520 = scmp.lt.s32.totalorder %s29, 1
          %s521 = scalar_select %p520, %s29, 1
          %s522 = smul.addr %s521, 4
          %s523 = scalar_lea.vmem %s1, %s522
        $region80: #{data_embedding_forward.1} parent=71 // pred_fallthru
          _
      $region72: #{data_embedding_forward.1} parent=5 // pred_fallthru
        _
      %p524 = scmp.le.s32.totalorder 1, %s29
      %p525 = scmp.lt.s32.totalorder %s29, 3
      %p526 = pnand %p524, %p525
      %p527 = pneg %p526
      // Predicated region
      $region81: #{data_embedding_forward.1} parent=5 // pred_check
        _
      $region82: #{data_embedding_forward.1} parent=5 // pred_check_branch
        %529 = sbr.rel (%p526) target = $region84
      $region83: #{data_embedding_forward.1} parent=5 // pred_region
        %s530 = ssub.s32 %s29, 1
        // Predicated region
        $region85: #{data_embedding_forward.1} parent=83 // pred_check
          %p531 = pneg %p186
        $region86: #{data_embedding_forward.1} parent=83 // pred_check_branch
          %533 = sbr.rel (%p531) target = $region88
        $region87: #{data_embedding_forward.1} parent=83 // pred_region
          %534 = dma.done [#allocation3], 64
        $region88: #{data_embedding_forward.1} parent=83 // pred_fallthru
          _
        // Predicated region
        $region89: #{data_embedding_forward.1} parent=83 // pred_check
          %p535 = pneg %p249
        $region90: #{data_embedding_forward.1} parent=83 // pred_check_branch
          %537 = sbr.rel (%p535) target = $region92
        $region91: #{data_embedding_forward.1} parent=83 // pred_region
          %538 = dma.done [#allocation6], 16
        $region92: #{data_embedding_forward.1} parent=83 // pred_fallthru
          _
        // Predicated region
        $region93: #{data_embedding_forward.1} parent=83 // pred_check
          %p539 = pneg %p270
        $region94: #{data_embedding_forward.1} parent=83 // pred_check_branch
          %541 = sbr.rel (%p539) target = $region96
        $region95: #{data_embedding_forward.1} parent=83 // pred_region
          %542 = dma.done [#allocation6], 16
        $region96: #{data_embedding_forward.1} parent=83 // pred_fallthru
          _
        // Predicated region
        $region97: #{data_embedding_forward.1} parent=83 // pred_check
          %p543 = pneg %p291
        $region98: #{data_embedding_forward.1} parent=83 // pred_check_branch
          %545 = sbr.rel (%p543) target = $region100
        $region99: #{data_embedding_forward.1} parent=83 // pred_region
          %546 = dma.done [#allocation9], 128
        $region100: #{data_embedding_forward.1} parent=83 // pred_fallthru
          _
        // Predicated region
        $region101: #{data_embedding_forward.1} parent=83 // pred_check
          %p547 = pneg %p354
        $region102: #{data_embedding_forward.1} parent=83 // pred_check_branch
          %549 = sbr.rel (%p547) target = $region104
        $region103: #{data_embedding_forward.1} parent=83 // pred_region
          %550 = dma.done [#allocation9], 128
        $region104: #{data_embedding_forward.1} parent=83 // pred_fallthru
          _
        // Predicated region
        $region105: #{data_embedding_forward.1} parent=83 // pred_check
          %p551 = pneg %p375
        $region106: #{data_embedding_forward.1} parent=83 // pred_check_branch
          %553 = sbr.rel (%p551) target = $region108
        $region107: #{data_embedding_forward.1} parent=83 // pred_region
          %554 = dma.done [#allocation12], 128
        $region108: #{data_embedding_forward.1} parent=83 // pred_fallthru
          _
        %p555 = scmp.lt.s32.totalorder %s34, 1
        %s556 = scalar_select %p555, %s34, 1
        %s557 = smul.addr %s556, 8
        %s558 = scalar_lea.vmem %s0, %s557
        %p559 = pneg %p55
        %p560 = pneg %p52
        %p561 = scmp.lt.s32.totalorder %s34, 1
        %s562 = scalar_select %p561, %s34, 1
        %s563 = smul.addr %s562, 4
        %s564 = scalar_lea.vmem %s1, %s563
        %p565 = pneg %p81
        %p566 = pneg %p78
        %p567 = pneg %p102
        %p568 = pneg %p99
        %p569 = pneg %p123
        %p570 = pneg %p120
        %p571 = pneg %p144
        %p572 = pneg %p141
        %p573 = pneg %p165
        %p574 = pneg %p162
        %p575 = pneg %p186
        %p576 = pneg %p183
        %p577 = pneg %p207
        %p578 = pneg %p204
        %p579 = pneg %p228
        %p580 = pneg %p225
        %p581 = pneg %p249
        %p582 = pneg %p246
        %p583 = pneg %p270
        %p584 = pneg %p267
        %p585 = pneg %p291
        %p586 = pneg %p288
        %p587 = pneg %p312
        %p588 = pneg %p309
        %p589 = pneg %p333
        %p590 = pneg %p330
        %p591 = pneg %p354
        %p592 = pneg %p351
        %p593 = pneg %p375
        %p594 = pneg %p372
        %p595 = pneg %p401
        %p596 = pneg %p398
        %s597 = sand.u32 %s388, 1
        %s598 = scalar_lea.sflag [#allocation4], %s597
        %s599 = sand.u32 %s388, 1
        %s600 = smul.addr %s599, 8
        %s601 = scalar_lea.vmem [#allocation13], %s600
        %p602 = scmp.lt.s32.totalorder %s34, 1
        %s603 = scalar_select %p602, %s34, 1
        %s604 = smul.addr %s603, 8
        %s605 = scalar_lea.vmem %s0, %s604
        %p606 = scmp.lt.s32.totalorder %s34, 1
        %s607 = scalar_select %p606, %s34, 1
        %s608 = smul.addr %s607, 4
        %s609 = scalar_lea.vmem %s1, %s608
        %v610 = vld [vmem:[%s605] sm:$0xff]
        %v611 = vld [vmem:[%s609] sm:$0xf]
        %v612 = vld [vmem:[%s2] sm:$0xff]
        %vm613 = vcmask 64512
        %v615 = vsel %vm613, %v611, 0
        %617 = vmatprep.subr.mxu0 0.0
        %618 = vmatpush1.msra.mxu0 %v612
        %619 = vmatprep.subr.mxu0 0.0
        %620 = vmatpush1.msra.mxu0 0.0
        %621 = vmatprep.subr.mxu0 0.0
        %622 = vmatpush1.msra.mxu0 0.0
        %623 = vmatprep.subr.mxu0 0.0
        %624 = vmatpush1.msra.mxu0 0.0
        %625 = vmatprep.subr.mxu0 0.0
        %626 = vmatpush1.msra.mxu0 0.0
        %627 = vmatprep.subr.mxu0 0.0
        %628 = vmatpush1.msra.mxu0 0.0
        %629 = vmatprep.subr.mxu0 0.0
        %630 = vmatpush1.msra.mxu0 0.0
        %631 = vmatprep.subr.mxu0 0.0
        %632 = vmatpush1.msra.mxu0 0.0
        %633 = vmatprep.subr.mxu0 0.0
        %634 = vmatpush1.msra.mxu0 0.0
        %635 = vmatprep.subr.mxu0 0.0
        %636 = vmatpush1.msra.mxu0 0.0
        %637 = vmatprep.subr.mxu0 0.0
        %638 = vmatpush1.msra.mxu0 0.0
        %639 = vmatprep.subr.mxu0 0.0
        %640 = vmatpush1.msra.mxu0 0.0
        %641 = vmatprep.subr.mxu0 0.0
        %642 = vmatpush1.msra.mxu0 0.0
        %643 = vmatprep.subr.mxu0 0.0
        %644 = vmatpush1.msra.mxu0 0.0
        %645 = vmatprep.subr.mxu0 0.0
        %646 = vmatpush1.msra.mxu0 0.0
        %647 = vmatprep.subr.mxu0 0.0
        %648 = vmatpush1.msra.mxu0 0.0
        %649 = vmatprep.subr.mxu0 0.0
        %650 = vmatpush1.msra.mxu0 0.0
        %651 = vmatprep.subr.mxu0 0.0
        %652 = vmatpush1.msra.mxu0 0.0
        %653 = vmatprep.subr.mxu0 0.0
        %654 = vmatpush1.msra.mxu0 0.0
        %655 = vmatprep.subr.mxu0 0.0
        %656 = vmatpush1.msra.mxu0 0.0
        %657 = vmatprep.subr.mxu0 0.0
        %658 = vmatpush1.msra.mxu0 0.0
        %659 = vmatprep.subr.mxu0 0.0
        %660 = vmatpush1.msra.mxu0 0.0
        %661 = vmatprep.subr.mxu0 0.0
        %662 = vmatpush1.msra.mxu0 0.0
        %663 = vmatprep.subr.mxu0 0.0
        %664 = vmatpush1.msra.mxu0 0.0
        %665 = vmatprep.subr.mxu0 0.0
        %666 = vmatpush1.msra.mxu0 0.0
        %667 = vmatprep.subr.mxu0 0.0
        %668 = vmatpush1.msra.mxu0 0.0
        %669 = vmatprep.subr.mxu0 0.0
        %670 = vmatpush1.msra.mxu0 0.0
        %671 = vmatprep.subr.mxu0 0.0
        %672 = vmatpush1.msra.mxu0 0.0
        %673 = vmatprep.subr.mxu0 0.0
        %674 = vmatpush1.msra.mxu0 0.0
        %675 = vmatprep.subr.mxu0 0.0
        %676 = vmatpush1.msra.mxu0 0.0
        %677 = vmatprep.subr.mxu0 0.0
        %678 = vmatpush1.msra.mxu0 0.0
        %679 = vmatprep.subr.mxu0 0.0
        %680 = vmatpush1.msra.mxu0 0.0
        %681 = vmatprep.mubr.f32.mxu0 0.0
        %682 = vmatmul.mubr.f32.gmra.mrb[0].mxu0 %v615
        %v683 = vpop.f32.mrb[0].mxu0
        %v684 = vadd.f32 0.0, %v683
        %v685 = vpop.f32.mrb[0].mxu0
        %686 = vdwg.mxu0
        %v687 = vld [vmem:[%s3] sm:$0xff]
        %v688 = vld [vmem:[%s4] sm:$0x1]
        %v690 = vlaneseq
        %v691 = vshrl.u32 %v690, 7
        %v692 = vsub.s32 0, %v691
        %v693 = vrot.slane %v688, %v692
        %695 = vmatprep.subr.mxu0 0.0
        %696 = vmatpush1.msra.mxu0 %v687
        %697 = vmatprep.subr.mxu0 0.0
        %698 = vmatpush1.msra.mxu0 0.0
        %699 = vmatprep.subr.mxu0 0.0
        %700 = vmatpush1.msra.mxu0 0.0
        %701 = vmatprep.subr.mxu0 0.0
        %702 = vmatpush1.msra.mxu0 0.0
        %703 = vmatprep.subr.mxu0 0.0
        %704 = vmatpush1.msra.mxu0 0.0
        %705 = vmatprep.subr.mxu0 0.0
        %706 = vmatpush1.msra.mxu0 0.0
        %707 = vmatprep.subr.mxu0 0.0
        %708 = vmatpush1.msra.mxu0 0.0
        %709 = vmatprep.subr.mxu0 0.0
        %710 = vmatpush1.msra.mxu0 0.0
        %711 = vmatprep.subr.mxu0 0.0
        %712 = vmatpush1.msra.mxu0 0.0
        %713 = vmatprep.subr.mxu0 0.0
        %714 = vmatpush1.msra.mxu0 0.0
        %715 = vmatprep.subr.mxu0 0.0
        %716 = vmatpush1.msra.mxu0 0.0
        %717 = vmatprep.subr.mxu0 0.0
        %718 = vmatpush1.msra.mxu0 0.0
        %719 = vmatprep.subr.mxu0 0.0
        %720 = vmatpush1.msra.mxu0 0.0
        %721 = vmatprep.subr.mxu0 0.0
        %722 = vmatpush1.msra.mxu0 0.0
        %723 = vmatprep.subr.mxu0 0.0
        %724 = vmatpush1.msra.mxu0 0.0
        %725 = vmatprep.subr.mxu0 0.0
        %726 = vmatpush1.msra.mxu0 0.0
        %727 = vmatprep.subr.mxu0 0.0
        %728 = vmatpush1.msra.mxu0 0.0
        %729 = vmatprep.subr.mxu0 0.0
        %730 = vmatpush1.msra.mxu0 0.0
        %731 = vmatprep.subr.mxu0 0.0
        %732 = vmatpush1.msra.mxu0 0.0
        %733 = vmatprep.subr.mxu0 0.0
        %734 = vmatpush1.msra.mxu0 0.0
        %735 = vmatprep.subr.mxu0 0.0
        %736 = vmatpush1.msra.mxu0 0.0
        %737 = vmatprep.subr.mxu0 0.0
        %738 = vmatpush1.msra.mxu0 0.0
        %739 = vmatprep.subr.mxu0 0.0
        %740 = vmatpush1.msra.mxu0 0.0
        %741 = vmatprep.subr.mxu0 0.0
        %742 = vmatpush1.msra.mxu0 0.0
        %743 = vmatprep.subr.mxu0 0.0
        %744 = vmatpush1.msra.mxu0 0.0
        %745 = vmatprep.subr.mxu0 0.0
        %746 = vmatpush1.msra.mxu0 0.0
        %747 = vmatprep.subr.mxu0 0.0
        %748 = vmatpush1.msra.mxu0 0.0
        %749 = vmatprep.subr.mxu0 0.0
        %750 = vmatpush1.msra.mxu0 0.0
        %751 = vmatprep.subr.mxu0 0.0
        %752 = vmatpush1.msra.mxu0 0.0
        %753 = vmatprep.subr.mxu0 0.0
        %754 = vmatpush1.msra.mxu0 0.0
        %755 = vmatprep.subr.mxu0 0.0
        %756 = vmatpush1.msra.mxu0 0.0
        %757 = vmatprep.subr.mxu0 0.0
        %758 = vmatpush1.msra.mxu0 0.0
        %759 = vmatprep.mubr.f32.mxu0 0.0
        %760 = vmatmul.mubr.f32.gmra.mrb[0].mxu0 %v615
        %v761 = vpop.f32.mrb[0].mxu0
        %v762 = vadd.f32 %v693, %v761
        %v763 = vpop.f32.mrb[0].mxu0
        %764 = vdwg.mxu0
        %v765 = vld [vmem:[%s5] sm:$0x1]
        %v766 = vld [vmem:[#allocation2] sm:$0xf]
        %v769 = vunpack.c.l.s4 1966171168
        %v770 = vunpack.c.0.s8 %v769
        %v771 = vlaneseq
        %v772 = vshrl.u32 %v771, 7
        %v773 = vsub.s32 %v770, %v772
        %v774 = vrot.slane %v684, %v773
        %v775 = vcombine.high %v774, %v774
        %v777 = vunpack.c.l.s4 1966171168
        %v778 = vunpack.c.0.s8 %v777
        %v779 = vlaneseq
        %v780 = vshrl.u32 %v779, 7
        %v781 = vsub.s32 %v778, %v780
        %v782 = vrot.slane %v774, %v781
        %v784 = vunpack.c.l.s4 1966171168
        %v785 = vunpack.c.0.s8 %v784
        %v786 = vlaneseq
        %v787 = vshrl.u32 %v786, 7
        %v788 = vsub.s32 %v785, %v787
        %v789 = vrot.slane %v775, %v788
        %v790 = vcombine.high %v782, %v782
        %v791 = vcombine.high %v789, %v789
        %v792 = vlaneseq
        %v793 = vshrl.u32 %v792, 7
        %v794 = vsub.s32 0, %v793
        %v795 = vrot.slane %v782, %v794
        %v796 = vlaneseq
        %v797 = vshrl.u32 %v796, 7
        %v798 = vsub.s32 0, %v797
        %v799 = vrot.slane %v789, %v798
        %v800 = vlaneseq
        %v801 = vshrl.u32 %v800, 7
        %v802 = vsub.s32 0, %v801
        %v803 = vrot.slane %v790, %v802
        %v804 = vlaneseq
        %v805 = vshrl.u32 %v804, 7
        %v806 = vsub.s32 0, %v805
        %v807 = vrot.slane %v791, %v806
        %v812 = vadd.f32 %v795, %v762
        %v813 = vadd.f32 %v799, %v762
        %v814 = vadd.f32 %v803, %v762
        %v815 = vadd.f32 %v807, %v762
        %vm816 = vcmp.ge.f32.partialorder %v812, 0.0
        %vm817 = vcmp.ge.f32.partialorder %v813, 0.0
        %vm818 = vcmp.ge.f32.partialorder %v814, 0.0
        %vm819 = vcmp.ge.f32.partialorder %v815, 0.0
        %v820 = vmul.f32 %v812, 0.2
        %v821 = vmul.f32 %v813, 0.2
        %v822 = vmul.f32 %v814, 0.2
        %v823 = vmul.f32 %v815, 0.2
        %v824 = vsel %vm816, %v812, %v820
        %v825 = vsel %vm817, %v813, %v821
        %v826 = vsel %vm818, %v814, %v822
        %v827 = vsel %vm819, %v815, %v823
        %v829 = vlaneseq
        %v830 = vshrl.u32 %v829, 7
        %v831 = vsub.s32 0, %v830
        %v832 = vrot.slane %v765, %v831
        %v834 = vmul.f32 %v824, %v832
        %v835 = vmul.f32 %v825, %v832
        %v836 = vmul.f32 %v826, %v832
        %v837 = vmul.f32 %v827, %v832
        %vm838 = vcmask 519168
        %v839 = vsel %vm838, %v834, 0.0
        %840 = vadd.xlane.f32.xlu0 %v839
        %v841 = vpop.xlane.xlu0 %840
        %v842 = vsel %vm838, %v835, 0.0
        %843 = vadd.xlane.f32.xlu0 %v842
        %v844 = vpop.xlane.xlu0 %843
        %v845 = vsel %vm838, %v836, 0.0
        %846 = vadd.xlane.f32.xlu0 %v845
        %v847 = vpop.xlane.xlu0 %846
        %v848 = vsel %vm838, %v837, 0.0
        %849 = vadd.xlane.f32.xlu0 %v848
        %v850 = vpop.xlane.xlu0 %849
        %v852 = vlaneseq
        %v853 = vshrl.u32 %v852, 7
        %v854 = vsub.s32 0, %v853
        %v855 = vrot.slane %v766, %v854
        %857 = vbcast.lane.b32.xlu0 %v855, 256
        %v858 = vpop.permute.xlu0 %857
        %v859 = vlaneseq
        %v860 = vshrl.u32 %v859, 7
        %v861 = vsub.s32 1, %v860
        %v862 = vrot.slane %v766, %v861
        %864 = vbcast.lane.b32.xlu0 %v862, 256
        %v865 = vpop.permute.xlu0 %864
        %v866 = vlaneseq
        %v867 = vshrl.u32 %v866, 7
        %v868 = vsub.s32 2, %v867
        %v869 = vrot.slane %v766, %v868
        %871 = vbcast.lane.b32.xlu0 %v869, 256
        %v872 = vpop.permute.xlu0 %871
        %v873 = vlaneseq
        %v874 = vshrl.u32 %v873, 7
        %v875 = vsub.s32 3, %v874
        %v876 = vrot.slane %v766, %v875
        %878 = vbcast.lane.b32.xlu0 %v876, 256
        %v879 = vpop.permute.xlu0 %878
        %v884 = vadd.f32 %v841, %v858
        %v885 = vadd.f32 %v844, %v865
        %v886 = vadd.f32 %v847, %v872
        %v887 = vadd.f32 %v850, %v879
        %892 = vset.pattern.permute.xlu0 0
        %893 = vperm.xlu0 %892, %v884
        %v894 = vpop.permute.xlu0 %893
        %895 = vset.pattern.permute.xlu0 0
        %896 = vperm.xlu0 %895, %v885
        %v897 = vpop.permute.xlu0 %896
        %898 = vset.pattern.permute.xlu0 0
        %899 = vperm.xlu0 %898, %v886
        %v900 = vpop.permute.xlu0 %899
        %901 = vset.pattern.permute.xlu0 0
        %902 = vperm.xlu0 %901, %v887
        %v903 = vpop.permute.xlu0 %902
        %v904 = vlaneseq
        %v905 = vand.u32 %v904, 127
        %v906 = vlaneseq
        %v907 = vshrl.u32 %v906, 7
        %v908 = vsub.s32 %v905, %v907
        %v909 = vrot.slane %v894, %v908
        %v910 = vlaneseq
        %v911 = vshrl.u32 %v910, 7
        %v912 = vsub.s32 %v905, %v911
        %v913 = vrot.slane %v897, %v912
        %v914 = vlaneseq
        %v915 = vshrl.u32 %v914, 7
        %v916 = vsub.s32 %v905, %v915
        %v917 = vrot.slane %v900, %v916
        %v918 = vlaneseq
        %v919 = vshrl.u32 %v918, 7
        %v920 = vsub.s32 %v905, %v919
        %v921 = vrot.slane %v903, %v920
        %vm922 = vcmask 1041409
        %v923 = vsel %vm922, %v913, %v909
        %vm924 = vcmask 1042434
        %v925 = vsel %vm924, %v917, %v923
        %vm926 = vcmask 1043459
        %v927 = vsel %vm926, %v921, %v925
        %vm929 = vcmask 27648
        %v930 = vsel %vm929, %v927, -inf
        %931 = vmax.xlane.f32.xlu0 %v930
        %v932 = vpop.xlane.xlu0 %931
        %v934 = vlaneseq
        %v935 = vshrl.u32 %v934, 7
        %v936 = vsub.s32 0, %v935
        %v937 = vrot.slane %v932, %v936
        %v938 = vlaneseq
        %v939 = vshrl.u32 %v938, 7
        %v940 = vsub.s32 1, %v939
        %v941 = vrot.slane %v932, %v940
        %v942 = vlaneseq
        %v943 = vshrl.u32 %v942, 7
        %v944 = vsub.s32 2, %v943
        %v945 = vrot.slane %v932, %v944
        %v946 = vlaneseq
        %v947 = vshrl.u32 %v946, 7
        %v948 = vsub.s32 3, %v947
        %v949 = vrot.slane %v932, %v948
        %v954 = vsub.f32 %v884, %v937
        %v955 = vsub.f32 %v885, %v941
        %v956 = vsub.f32 %v886, %v945
        %v957 = vsub.f32 %v887, %v949
        %v958 = vmul.f32 %v954, 1.442695
        %v959 = vpow.pop %v958
        %v960 = vmul.f32 %v955, 1.442695
        %v961 = vpow.pop %v960
        %v962 = vmul.f32 %v956, 1.442695
        %v963 = vpow.pop %v962
        %v964 = vmul.f32 %v957, 1.442695
        %v965 = vpow.pop %v964
        %970 = vset.pattern.permute.xlu0 0
        %971 = vperm.xlu0 %970, %v959
        %v972 = vpop.permute.xlu0 %971
        %973 = vset.pattern.permute.xlu0 0
        %974 = vperm.xlu0 %973, %v961
        %v975 = vpop.permute.xlu0 %974
        %976 = vset.pattern.permute.xlu0 0
        %977 = vperm.xlu0 %976, %v963
        %v978 = vpop.permute.xlu0 %977
        %979 = vset.pattern.permute.xlu0 0
        %980 = vperm.xlu0 %979, %v965
        %v981 = vpop.permute.xlu0 %980
        %v982 = vlaneseq
        %v983 = vshrl.u32 %v982, 7
        %v984 = vsub.s32 %v905, %v983
        %v985 = vrot.slane %v972, %v984
        %v986 = vlaneseq
        %v987 = vshrl.u32 %v986, 7
        %v988 = vsub.s32 %v905, %v987
        %v989 = vrot.slane %v975, %v988
        %v990 = vlaneseq
        %v991 = vshrl.u32 %v990, 7
        %v992 = vsub.s32 %v905, %v991
        %v993 = vrot.slane %v978, %v992
        %v994 = vlaneseq
        %v995 = vshrl.u32 %v994, 7
        %v996 = vsub.s32 %v905, %v995
        %v997 = vrot.slane %v981, %v996
        %v998 = vsel %vm922, %v989, %v985
        %v999 = vsel %vm924, %v993, %v998
        %v1000 = vsel %vm926, %v997, %v999
        %v1002 = vsel %vm929, %v1000, 0.0
        %1003 = vadd.xlane.f32.xlu0 %v1002
        %v1004 = vpop.xlane.xlu0 %1003
        %v1005 = vrcp.pop %v1004
        %v1007 = vlaneseq
        %v1008 = vshrl.u32 %v1007, 7
        %v1009 = vsub.s32 0, %v1008
        %v1010 = vrot.slane %v1005, %v1009
        %v1011 = vlaneseq
        %v1012 = vshrl.u32 %v1011, 7
        %v1013 = vsub.s32 1, %v1012
        %v1014 = vrot.slane %v1005, %v1013
        %v1015 = vlaneseq
        %v1016 = vshrl.u32 %v1015, 7
        %v1017 = vsub.s32 2, %v1016
        %v1018 = vrot.slane %v1005, %v1017
        %v1019 = vlaneseq
        %v1020 = vshrl.u32 %v1019, 7
        %v1021 = vsub.s32 3, %v1020
        %v1022 = vrot.slane %v1005, %v1021
        %v1027 = vmul.f32 %v959, %v1010
        %v1028 = vmul.f32 %v961, %v1014
        %v1029 = vmul.f32 %v963, %v1018
        %v1030 = vmul.f32 %v965, %v1022
        %1035 = vset.pattern.permute.xlu0 0
        %1036 = vperm.xlu0 %1035, %v1027
        %v1037 = vpop.permute.xlu0 %1036
        %1038 = vset.pattern.permute.xlu0 0
        %1039 = vperm.xlu0 %1038, %v1028
        %v1040 = vpop.permute.xlu0 %1039
        %1041 = vset.pattern.permute.xlu0 0
        %1042 = vperm.xlu0 %1041, %v1029
        %v1043 = vpop.permute.xlu0 %1042
        %1044 = vset.pattern.permute.xlu0 0
        %1045 = vperm.xlu0 %1044, %v1030
        %v1046 = vpop.permute.xlu0 %1045
        %v1047 = vlaneseq
        %v1048 = vshrl.u32 %v1047, 7
        %v1049 = vsub.s32 %v905, %v1048
        %v1050 = vrot.slane %v1037, %v1049
        %v1051 = vlaneseq
        %v1052 = vshrl.u32 %v1051, 7
        %v1053 = vsub.s32 %v905, %v1052
        %v1054 = vrot.slane %v1040, %v1053
        %v1055 = vlaneseq
        %v1056 = vshrl.u32 %v1055, 7
        %v1057 = vsub.s32 %v905, %v1056
        %v1058 = vrot.slane %v1043, %v1057
        %v1059 = vlaneseq
        %v1060 = vshrl.u32 %v1059, 7
        %v1061 = vsub.s32 %v905, %v1060
        %v1062 = vrot.slane %v1046, %v1061
        %v1063 = vsel %vm922, %v1054, %v1050
        %v1064 = vsel %vm924, %v1058, %v1063
        %v1065 = vsel %vm926, %v1062, %v1064
        %vm1066 = vcmask 31744
        %v1068 = vsel %vm1066, %v610, 0
        %v1070 = vsel %vm1066, %v1065, 0
        %1072 = vmatprep.subr.mxu0 0.0
        %1073 = vmatpush1.xpose.msra.mxu0 %v1070
        %1074 = vmatprep.subr.mxu0 0.0
        %1075 = vmatpush1.xpose.msra.mxu0 0.0
        %1076 = vmatprep.subr.mxu0 0.0
        %1077 = vmatpush1.xpose.msra.mxu0 0.0
        %1078 = vmatprep.subr.mxu0 0.0
        %1079 = vmatpush1.xpose.msra.mxu0 0.0
        %1080 = vmatprep.subr.mxu0 0.0
        %1081 = vmatpush1.xpose.msra.mxu0 0.0
        %1082 = vmatprep.subr.mxu0 0.0
        %1083 = vmatpush1.xpose.msra.mxu0 0.0
        %1084 = vmatprep.subr.mxu0 0.0
        %1085 = vmatpush1.xpose.msra.mxu0 0.0
        %1086 = vmatprep.subr.mxu0 0.0
        %1087 = vmatpush1.xpose.msra.mxu0 0.0
        %1088 = vmatprep.subr.mxu0 0.0
        %1089 = vmatpush1.xpose.msra.mxu0 0.0
        %1090 = vmatprep.subr.mxu0 0.0
        %1091 = vmatpush1.xpose.msra.mxu0 0.0
        %1092 = vmatprep.subr.mxu0 0.0
        %1093 = vmatpush1.xpose.msra.mxu0 0.0
        %1094 = vmatprep.subr.mxu0 0.0
        %1095 = vmatpush1.xpose.msra.mxu0 0.0
        %1096 = vmatprep.subr.mxu0 0.0
        %1097 = vmatpush1.xpose.msra.mxu0 0.0
        %1098 = vmatprep.subr.mxu0 0.0
        %1099 = vmatpush1.xpose.msra.mxu0 0.0
        %1100 = vmatprep.subr.mxu0 0.0
        %1101 = vmatpush1.xpose.msra.mxu0 0.0
        %1102 = vmatprep.subr.mxu0 0.0
        %1103 = vmatpush1.xpose.msra.mxu0 0.0
        %1104 = vmatprep.subr.mxu0 0.0
        %1105 = vmatpush1.xpose.msra.mxu0 0.0
        %1106 = vmatprep.subr.mxu0 0.0
        %1107 = vmatpush1.xpose.msra.mxu0 0.0
        %1108 = vmatprep.subr.mxu0 0.0
        %1109 = vmatpush1.xpose.msra.mxu0 0.0
        %1110 = vmatprep.subr.mxu0 0.0
        %1111 = vmatpush1.xpose.msra.mxu0 0.0
        %1112 = vmatprep.subr.mxu0 0.0
        %1113 = vmatpush1.xpose.msra.mxu0 0.0
        %1114 = vmatprep.subr.mxu0 0.0
        %1115 = vmatpush1.xpose.msra.mxu0 0.0
        %1116 = vmatprep.subr.mxu0 0.0
        %1117 = vmatpush1.xpose.msra.mxu0 0.0
        %1118 = vmatprep.subr.mxu0 0.0
        %1119 = vmatpush1.xpose.msra.mxu0 0.0
        %1120 = vmatprep.subr.mxu0 0.0
        %1121 = vmatpush1.xpose.msra.mxu0 0.0
        %1122 = vmatprep.subr.mxu0 0.0
        %1123 = vmatpush1.xpose.msra.mxu0 0.0
        %1124 = vmatprep.subr.mxu0 0.0
        %1125 = vmatpush1.xpose.msra.mxu0 0.0
        %1126 = vmatprep.subr.mxu0 0.0
        %1127 = vmatpush1.xpose.msra.mxu0 0.0
        %1128 = vmatprep.subr.mxu0 0.0
        %1129 = vmatpush1.xpose.msra.mxu0 0.0
        %1130 = vmatprep.subr.mxu0 0.0
        %1131 = vmatpush1.xpose.msra.mxu0 0.0
        %1132 = vmatprep.subr.mxu0 0.0
        %1133 = vmatpush1.xpose.msra.mxu0 0.0
        %1134 = vmatprep.subr.mxu0 0.0
        %1135 = vmatpush1.xpose.msra.mxu0 0.0
        %1136 = vmatprep.mubr.f32.mxu0 0.0
        %1137 = vmatmul.mubr.f32.gmra.mrb[0].mxu0 %v1068
        %v1138 = vpop.f32.mrb[0].mxu0
        %v1139 = vadd.f32 0.0, %v1138
        %v1140 = vpop.f32.mrb[0].mxu0
        %1141 = vdwg.mxu0
        %v1142 = vxor.u32 %v1139, 2147483648
        %v1143 = vmul.f32 %v1142, 1.442695
        %v1144 = vpow.pop %v1143
        %v1145 = vadd.f32 %v1144, 1.0
        %v1146 = vrcp.pop %v1145
        %v1147 = vmul.f32 1.0, %v1146
        %v1148 = vld [vmem:[%s7] sm:$0xf]
        %vm1149 = vcmask 1043456
        %v1151 = vsel %vm1149, %v1148, 0
        %1153 = vmatprep.subr.mxu0 0.0
        %1154 = vmatpush1.msra.mxu0 %v1151
        %1155 = vmatprep.subr.mxu0 0.0
        %1156 = vmatpush1.msra.mxu0 0.0
        %1157 = vmatprep.subr.mxu0 0.0
        %1158 = vmatpush1.msra.mxu0 0.0
        %1159 = vmatprep.subr.mxu0 0.0
        %1160 = vmatpush1.msra.mxu0 0.0
        %1161 = vmatprep.subr.mxu0 0.0
        %1162 = vmatpush1.msra.mxu0 0.0
        %1163 = vmatprep.subr.mxu0 0.0
        %1164 = vmatpush1.msra.mxu0 0.0
        %1165 = vmatprep.subr.mxu0 0.0
        %1166 = vmatpush1.msra.mxu0 0.0
        %1167 = vmatprep.subr.mxu0 0.0
        %1168 = vmatpush1.msra.mxu0 0.0
        %1169 = vmatprep.subr.mxu0 0.0
        %1170 = vmatpush1.msra.mxu0 0.0
        %1171 = vmatprep.subr.mxu0 0.0
        %1172 = vmatpush1.msra.mxu0 0.0
        %1173 = vmatprep.subr.mxu0 0.0
        %1174 = vmatpush1.msra.mxu0 0.0
        %1175 = vmatprep.subr.mxu0 0.0
        %1176 = vmatpush1.msra.mxu0 0.0
        %1177 = vmatprep.subr.mxu0 0.0
        %1178 = vmatpush1.msra.mxu0 0.0
        %1179 = vmatprep.subr.mxu0 0.0
        %1180 = vmatpush1.msra.mxu0 0.0
        %1181 = vmatprep.subr.mxu0 0.0
        %1182 = vmatpush1.msra.mxu0 0.0
        %1183 = vmatprep.subr.mxu0 0.0
        %1184 = vmatpush1.msra.mxu0 0.0
        %1185 = vmatprep.subr.mxu0 0.0
        %1186 = vmatpush1.msra.mxu0 0.0
        %1187 = vmatprep.subr.mxu0 0.0
        %1188 = vmatpush1.msra.mxu0 0.0
        %1189 = vmatprep.subr.mxu0 0.0
        %1190 = vmatpush1.msra.mxu0 0.0
        %1191 = vmatprep.subr.mxu0 0.0
        %1192 = vmatpush1.msra.mxu0 0.0
        %1193 = vmatprep.subr.mxu0 0.0
        %1194 = vmatpush1.msra.mxu0 0.0
        %1195 = vmatprep.subr.mxu0 0.0
        %1196 = vmatpush1.msra.mxu0 0.0
        %1197 = vmatprep.subr.mxu0 0.0
        %1198 = vmatpush1.msra.mxu0 0.0
        %1199 = vmatprep.subr.mxu0 0.0
        %1200 = vmatpush1.msra.mxu0 0.0
        %1201 = vmatprep.subr.mxu0 0.0
        %1202 = vmatpush1.msra.mxu0 0.0
        %1203 = vmatprep.subr.mxu0 0.0
        %1204 = vmatpush1.msra.mxu0 0.0
        %1205 = vmatprep.subr.mxu0 0.0
        %1206 = vmatpush1.msra.mxu0 0.0
        %1207 = vmatprep.subr.mxu0 0.0
        %1208 = vmatpush1.msra.mxu0 0.0
        %1209 = vmatprep.subr.mxu0 0.0
        %1210 = vmatpush1.msra.mxu0 0.0
        %1211 = vmatprep.subr.mxu0 0.0
        %1212 = vmatpush1.msra.mxu0 0.0
        %1213 = vmatprep.subr.mxu0 0.0
        %1214 = vmatpush1.msra.mxu0 0.0
        %1215 = vmatprep.subr.mxu0 0.0
        %1216 = vmatpush1.msra.mxu0 0.0
        %1217 = vmatprep.mubr.f32.mxu0 0.0
        %1218 = vmatmul.mubr.f32.gmra.mrb[0].mxu0 %v1068
        %v1219 = vpop.f32.mrb[0].mxu0
        %v1220 = vadd.f32 0.0, %v1219
        %v1221 = vpop.f32.mrb[0].mxu0
        %1222 = vdwg.mxu0
        %v1223 = vld [vmem:[%s8] sm:$0xf]
        %v1224 = vld [vmem:[#allocation5] sm:$0x1]
        %v1226 = vlaneseq
        %v1227 = vshrl.u32 %v1226, 7
        %v1228 = vsub.s32 0, %v1227
        %v1229 = vrot.slane %v1224, %v1228
        %v1232 = vsel %vm1149, %v1223, 0
        %1234 = vmatprep.subr.mxu0 0.0
        %1235 = vmatpush1.msra.mxu0 %v1232
        %1236 = vmatprep.subr.mxu0 0.0
        %1237 = vmatpush1.msra.mxu0 0.0
        %1238 = vmatprep.subr.mxu0 0.0
        %1239 = vmatpush1.msra.mxu0 0.0
        %1240 = vmatprep.subr.mxu0 0.0
        %1241 = vmatpush1.msra.mxu0 0.0
        %1242 = vmatprep.subr.mxu0 0.0
        %1243 = vmatpush1.msra.mxu0 0.0
        %1244 = vmatprep.subr.mxu0 0.0
        %1245 = vmatpush1.msra.mxu0 0.0
        %1246 = vmatprep.subr.mxu0 0.0
        %1247 = vmatpush1.msra.mxu0 0.0
        %1248 = vmatprep.subr.mxu0 0.0
        %1249 = vmatpush1.msra.mxu0 0.0
        %1250 = vmatprep.subr.mxu0 0.0
        %1251 = vmatpush1.msra.mxu0 0.0
        %1252 = vmatprep.subr.mxu0 0.0
        %1253 = vmatpush1.msra.mxu0 0.0
        %1254 = vmatprep.subr.mxu0 0.0
        %1255 = vmatpush1.msra.mxu0 0.0
        %1256 = vmatprep.subr.mxu0 0.0
        %1257 = vmatpush1.msra.mxu0 0.0
        %1258 = vmatprep.subr.mxu0 0.0
        %1259 = vmatpush1.msra.mxu0 0.0
        %1260 = vmatprep.subr.mxu0 0.0
        %1261 = vmatpush1.msra.mxu0 0.0
        %1262 = vmatprep.subr.mxu0 0.0
        %1263 = vmatpush1.msra.mxu0 0.0
        %1264 = vmatprep.subr.mxu0 0.0
        %1265 = vmatpush1.msra.mxu0 0.0
        %1266 = vmatprep.subr.mxu0 0.0
        %1267 = vmatpush1.msra.mxu0 0.0
        %1268 = vmatprep.subr.mxu0 0.0
        %1269 = vmatpush1.msra.mxu0 0.0
        %1270 = vmatprep.subr.mxu0 0.0
        %1271 = vmatpush1.msra.mxu0 0.0
        %1272 = vmatprep.subr.mxu0 0.0
        %1273 = vmatpush1.msra.mxu0 0.0
        %1274 = vmatprep.subr.mxu0 0.0
        %1275 = vmatpush1.msra.mxu0 0.0
        %1276 = vmatprep.subr.mxu0 0.0
        %1277 = vmatpush1.msra.mxu0 0.0
        %1278 = vmatprep.subr.mxu0 0.0
        %1279 = vmatpush1.msra.mxu0 0.0
        %1280 = vmatprep.subr.mxu0 0.0
        %1281 = vmatpush1.msra.mxu0 0.0
        %1282 = vmatprep.subr.mxu0 0.0
        %1283 = vmatpush1.msra.mxu0 0.0
        %1284 = vmatprep.subr.mxu0 0.0
        %1285 = vmatpush1.msra.mxu0 0.0
        %1286 = vmatprep.subr.mxu0 0.0
        %1287 = vmatpush1.msra.mxu0 0.0
        %1288 = vmatprep.subr.mxu0 0.0
        %1289 = vmatpush1.msra.mxu0 0.0
        %1290 = vmatprep.subr.mxu0 0.0
        %1291 = vmatpush1.msra.mxu0 0.0
        %1292 = vmatprep.subr.mxu0 0.0
        %1293 = vmatpush1.msra.mxu0 0.0
        %1294 = vmatprep.subr.mxu0 0.0
        %1295 = vmatpush1.msra.mxu0 0.0
        %1296 = vmatprep.subr.mxu0 0.0
        %1297 = vmatpush1.msra.mxu0 0.0
        %1298 = vmatprep.mubr.f32.mxu0 0.0
        %1299 = vmatmul.mubr.f32.gmra.mrb[0].mxu0 %v1068
        %v1300 = vpop.f32.mrb[0].mxu0
        %v1301 = vadd.f32 %v1229, %v1300
        %v1302 = vpop.f32.mrb[0].mxu0
        %1303 = vdwg.mxu0
        %v1304 = vld [vmem:[#allocation7] sm:$0x1]
        %v1305 = vld [vmem:[#allocation8] sm:$0xff]
        %v1307 = vcombine.high %v1220, %v1220
        %v1309 = vunpack.c.l.s4 1966171168
        %v1310 = vunpack.c.0.s8 %v1309
        %v1311 = vlaneseq
        %v1312 = vshrl.u32 %v1311, 7
        %v1313 = vsub.s32 %v1310, %v1312
        %v1314 = vrot.slane %v1220, %v1313
        %v1316 = vunpack.c.l.s4 1966171168
        %v1317 = vunpack.c.0.s8 %v1316
        %v1318 = vlaneseq
        %v1319 = vshrl.u32 %v1318, 7
        %v1320 = vsub.s32 %v1317, %v1319
        %v1321 = vrot.slane %v1307, %v1320
        %v1322 = vcombine.high %v1314, %v1314
        %v1323 = vcombine.high %v1321, %v1321
        %v1325 = vunpack.c.l.s4 1966171168
        %v1326 = vunpack.c.0.s8 %v1325
        %v1327 = vlaneseq
        %v1328 = vshrl.u32 %v1327, 7
        %v1329 = vsub.s32 %v1326, %v1328
        %v1330 = vrot.slane %v1314, %v1329
        %v1332 = vunpack.c.l.s4 1966171168
        %v1333 = vunpack.c.0.s8 %v1332
        %v1334 = vlaneseq
        %v1335 = vshrl.u32 %v1334, 7
        %v1336 = vsub.s32 %v1333, %v1335
        %v1337 = vrot.slane %v1321, %v1336
        %v1339 = vunpack.c.l.s4 1966171168
        %v1340 = vunpack.c.0.s8 %v1339
        %v1341 = vlaneseq
        %v1342 = vshrl.u32 %v1341, 7
        %v1343 = vsub.s32 %v1340, %v1342
        %v1344 = vrot.slane %v1322, %v1343
        %v1346 = vunpack.c.l.s4 1966171168
        %v1347 = vunpack.c.0.s8 %v1346
        %v1348 = vlaneseq
        %v1349 = vshrl.u32 %v1348, 7
        %v1350 = vsub.s32 %v1347, %v1349
        %v1351 = vrot.slane %v1323, %v1350
        %v1352 = vcombine.high %v1330, %v1330
        %v1353 = vcombine.high %v1337, %v1337
        %v1354 = vcombine.high %v1344, %v1344
        %v1355 = vcombine.high %v1351, %v1351
        %v1356 = vlaneseq
        %v1357 = vshrl.u32 %v1356, 7
        %v1358 = vsub.s32 0, %v1357
        %v1359 = vrot.slane %v1330, %v1358
        %v1360 = vlaneseq
        %v1361 = vshrl.u32 %v1360, 7
        %v1362 = vsub.s32 0, %v1361
        %v1363 = vrot.slane %v1344, %v1362
        %v1364 = vlaneseq
        %v1365 = vshrl.u32 %v1364, 7
        %v1366 = vsub.s32 0, %v1365
        %v1367 = vrot.slane %v1352, %v1366
        %v1368 = vlaneseq
        %v1369 = vshrl.u32 %v1368, 7
        %v1370 = vsub.s32 0, %v1369
        %v1371 = vrot.slane %v1354, %v1370
        %v1372 = vlaneseq
        %v1373 = vshrl.u32 %v1372, 7
        %v1374 = vsub.s32 0, %v1373
        %v1375 = vrot.slane %v1337, %v1374
        %v1376 = vlaneseq
        %v1377 = vshrl.u32 %v1376, 7
        %v1378 = vsub.s32 0, %v1377
        %v1379 = vrot.slane %v1351, %v1378
        %v1380 = vlaneseq
        %v1381 = vshrl.u32 %v1380, 7
        %v1382 = vsub.s32 0, %v1381
        %v1383 = vrot.slane %v1353, %v1382
        %v1384 = vlaneseq
        %v1385 = vshrl.u32 %v1384, 7
        %v1386 = vsub.s32 0, %v1385
        %v1387 = vrot.slane %v1355, %v1386
        %v1396 = vadd.f32 %v1359, %v1301
        %v1397 = vadd.f32 %v1363, %v1301
        %v1398 = vadd.f32 %v1367, %v1301
        %v1399 = vadd.f32 %v1371, %v1301
        %v1400 = vadd.f32 %v1375, %v1301
        %v1401 = vadd.f32 %v1379, %v1301
        %v1402 = vadd.f32 %v1383, %v1301
        %v1403 = vadd.f32 %v1387, %v1301
        %vm1404 = vcmp.ge.f32.partialorder %v1396, 0.0
        %vm1405 = vcmp.ge.f32.partialorder %v1397, 0.0
        %vm1406 = vcmp.ge.f32.partialorder %v1398, 0.0
        %vm1407 = vcmp.ge.f32.partialorder %v1399, 0.0
        %vm1408 = vcmp.ge.f32.partialorder %v1400, 0.0
        %vm1409 = vcmp.ge.f32.partialorder %v1401, 0.0
        %vm1410 = vcmp.ge.f32.partialorder %v1402, 0.0
        %vm1411 = vcmp.ge.f32.partialorder %v1403, 0.0
        %v1412 = vmul.f32 %v1396, 0.2
        %v1413 = vmul.f32 %v1397, 0.2
        %v1414 = vmul.f32 %v1398, 0.2
        %v1415 = vmul.f32 %v1399, 0.2
        %v1416 = vmul.f32 %v1400, 0.2
        %v1417 = vmul.f32 %v1401, 0.2
        %v1418 = vmul.f32 %v1402, 0.2
        %v1419 = vmul.f32 %v1403, 0.2
        %v1420 = vsel %vm1404, %v1396, %v1412
        %v1421 = vsel %vm1405, %v1397, %v1413
        %v1422 = vsel %vm1406, %v1398, %v1414
        %v1423 = vsel %vm1407, %v1399, %v1415
        %v1424 = vsel %vm1408, %v1400, %v1416
        %v1425 = vsel %vm1409, %v1401, %v1417
        %v1426 = vsel %vm1410, %v1402, %v1418
        %v1427 = vsel %vm1411, %v1403, %v1419
        %v1429 = vlaneseq
        %v1430 = vshrl.u32 %v1429, 7
        %v1431 = vsub.s32 0, %v1430
        %v1432 = vrot.slane %v1304, %v1431
        %v1434 = vmul.f32 %v1420, %v1432
        %v1435 = vmul.f32 %v1421, %v1432
        %v1436 = vmul.f32 %v1422, %v1432
        %v1437 = vmul.f32 %v1423, %v1432
        %v1438 = vmul.f32 %v1424, %v1432
        %v1439 = vmul.f32 %v1425, %v1432
        %v1440 = vmul.f32 %v1426, %v1432
        %v1441 = vmul.f32 %v1427, %v1432
        %vm1442 = vcmask 523264
        %v1443 = vsel %vm1442, %v1434, 0.0
        %1444 = vadd.xlane.f32.xlu0 %v1443
        %v1445 = vpop.xlane.xlu0 %1444
        %v1446 = vsel %vm1442, %v1435, 0.0
        %1447 = vadd.xlane.f32.xlu0 %v1446
        %v1448 = vpop.xlane.xlu0 %1447
        %v1449 = vsel %vm1442, %v1436, 0.0
        %1450 = vadd.xlane.f32.xlu0 %v1449
        %v1451 = vpop.xlane.xlu0 %1450
        %v1452 = vsel %vm1442, %v1437, 0.0
        %1453 = vadd.xlane.f32.xlu0 %v1452
        %v1454 = vpop.xlane.xlu0 %1453
        %v1455 = vsel %vm1442, %v1438, 0.0
        %1456 = vadd.xlane.f32.xlu0 %v1455
        %v1457 = vpop.xlane.xlu0 %1456
        %v1458 = vsel %vm1442, %v1439, 0.0
        %1459 = vadd.xlane.f32.xlu0 %v1458
        %v1460 = vpop.xlane.xlu0 %1459
        %v1461 = vsel %vm1442, %v1440, 0.0
        %1462 = vadd.xlane.f32.xlu0 %v1461
        %v1463 = vpop.xlane.xlu0 %1462
        %v1464 = vsel %vm1442, %v1441, 0.0
        %1465 = vadd.xlane.f32.xlu0 %v1464
        %v1466 = vpop.xlane.xlu0 %1465
        %v1468 = vlaneseq
        %v1469 = vshrl.u32 %v1468, 7
        %v1470 = vsub.s32 0, %v1469
        %v1471 = vrot.slane %v1305, %v1470
        %1473 = vbcast.lane.b32.xlu0 %v1471, 256
        %v1474 = vpop.permute.xlu0 %1473
        %v1475 = vlaneseq
        %v1476 = vshrl.u32 %v1475, 7
        %v1477 = vsub.s32 1, %v1476
        %v1478 = vrot.slane %v1305, %v1477
        %1480 = vbcast.lane.b32.xlu0 %v1478, 256
        %v1481 = vpop.permute.xlu0 %1480
        %v1482 = vlaneseq
        %v1483 = vshrl.u32 %v1482, 7
        %v1484 = vsub.s32 2, %v1483
        %v1485 = vrot.slane %v1305, %v1484
        %1487 = vbcast.lane.b32.xlu0 %v1485, 256
        %v1488 = vpop.permute.xlu0 %1487
        %v1489 = vlaneseq
        %v1490 = vshrl.u32 %v1489, 7
        %v1491 = vsub.s32 3, %v1490
        %v1492 = vrot.slane %v1305, %v1491
        %1494 = vbcast.lane.b32.xlu0 %v1492, 256
        %v1495 = vpop.permute.xlu0 %1494
        %v1496 = vlaneseq
        %v1497 = vshrl.u32 %v1496, 7
        %v1498 = vsub.s32 4, %v1497
        %v1499 = vrot.slane %v1305, %v1498
        %1501 = vbcast.lane.b32.xlu0 %v1499, 256
        %v1502 = vpop.permute.xlu0 %1501
        %v1503 = vlaneseq
        %v1504 = vshrl.u32 %v1503, 7
        %v1505 = vsub.s32 5, %v1504
        %v1506 = vrot.slane %v1305, %v1505
        %1508 = vbcast.lane.b32.xlu0 %v1506, 256
        %v1509 = vpop.permute.xlu0 %1508
        %v1510 = vlaneseq
        %v1511 = vshrl.u32 %v1510, 7
        %v1512 = vsub.s32 6, %v1511
        %v1513 = vrot.slane %v1305, %v1512
        %1515 = vbcast.lane.b32.xlu0 %v1513, 256
        %v1516 = vpop.permute.xlu0 %1515
        %v1517 = vlaneseq
        %v1518 = vshrl.u32 %v1517, 7
        %v1519 = vsub.s32 7, %v1518
        %v1520 = vrot.slane %v1305, %v1519
        %1522 = vbcast.lane.b32.xlu0 %v1520, 256
        %v1523 = vpop.permute.xlu0 %1522
        %v1532 = vadd.f32 %v1445, %v1474
        %v1533 = vadd.f32 %v1448, %v1481
        %v1534 = vadd.f32 %v1451, %v1488
        %v1535 = vadd.f32 %v1454, %v1495
        %v1536 = vadd.f32 %v1457, %v1502
        %v1537 = vadd.f32 %v1460, %v1509
        %v1538 = vadd.f32 %v1463, %v1516
        %v1539 = vadd.f32 %v1466, %v1523
        %1548 = vset.pattern.permute.xlu0 0
        %1549 = vperm.xlu0 %1548, %v1532
        %v1550 = vpop.permute.xlu0 %1549
        %1551 = vset.pattern.permute.xlu0 0
        %1552 = vperm.xlu0 %1551, %v1533
        %v1553 = vpop.permute.xlu0 %1552
        %1554 = vset.pattern.permute.xlu0 0
        %1555 = vperm.xlu0 %1554, %v1534
        %v1556 = vpop.permute.xlu0 %1555
        %1557 = vset.pattern.permute.xlu0 0
        %1558 = vperm.xlu0 %1557, %v1535
        %v1559 = vpop.permute.xlu0 %1558
        %1560 = vset.pattern.permute.xlu0 0
        %1561 = vperm.xlu0 %1560, %v1536
        %v1562 = vpop.permute.xlu0 %1561
        %1563 = vset.pattern.permute.xlu0 0
        %1564 = vperm.xlu0 %1563, %v1537
        %v1565 = vpop.permute.xlu0 %1564
        %1566 = vset.pattern.permute.xlu0 0
        %1567 = vperm.xlu0 %1566, %v1538
        %v1568 = vpop.permute.xlu0 %1567
        %1569 = vset.pattern.permute.xlu0 0
        %1570 = vperm.xlu0 %1569, %v1539
        %v1571 = vpop.permute.xlu0 %1570
        %v1572 = vlaneseq
        %v1573 = vshrl.u32 %v1572, 7
        %v1574 = vsub.s32 %v905, %v1573
        %v1575 = vrot.slane %v1550, %v1574
        %v1576 = vlaneseq
        %v1577 = vshrl.u32 %v1576, 7
        %v1578 = vsub.s32 %v905, %v1577
        %v1579 = vrot.slane %v1553, %v1578
        %v1580 = vlaneseq
        %v1581 = vshrl.u32 %v1580, 7
        %v1582 = vsub.s32 %v905, %v1581
        %v1583 = vrot.slane %v1556, %v1582
        %v1584 = vlaneseq
        %v1585 = vshrl.u32 %v1584, 7
        %v1586 = vsub.s32 %v905, %v1585
        %v1587 = vrot.slane %v1559, %v1586
        %v1588 = vlaneseq
        %v1589 = vshrl.u32 %v1588, 7
        %v1590 = vsub.s32 %v905, %v1589
        %v1591 = vrot.slane %v1562, %v1590
        %v1592 = vlaneseq
        %v1593 = vshrl.u32 %v1592, 7
        %v1594 = vsub.s32 %v905, %v1593
        %v1595 = vrot.slane %v1565, %v1594
        %v1596 = vlaneseq
        %v1597 = vshrl.u32 %v1596, 7
        %v1598 = vsub.s32 %v905, %v1597
        %v1599 = vrot.slane %v1568, %v1598
        %v1600 = vlaneseq
        %v1601 = vshrl.u32 %v1600, 7
        %v1602 = vsub.s32 %v905, %v1601
        %v1603 = vrot.slane %v1571, %v1602
        %v1604 = vsel %vm922, %v1579, %v1575
        %v1605 = vsel %vm924, %v1583, %v1604
        %v1606 = vsel %vm926, %v1587, %v1605
        %vm1607 = vcmask 1044484
        %v1608 = vsel %vm1607, %v1591, %v1606
        %vm1609 = vcmask 1045509
        %v1610 = vsel %vm1609, %v1595, %v1608
        %vm1611 = vcmask 1046534
        %v1612 = vsel %vm1611, %v1599, %v1610
        %vm1613 = vcmask 1047559
        %v1614 = vsel %vm1613, %v1603, %v1612
        %v1616 = vsel %vm613, %v1614, -inf
        %1617 = vmax.xlane.f32.xlu0 %v1616
        %v1618 = vpop.xlane.xlu0 %1617
        %v1620 = vlaneseq
        %v1621 = vshrl.u32 %v1620, 7
        %v1622 = vsub.s32 0, %v1621
        %v1623 = vrot.slane %v1618, %v1622
        %v1624 = vlaneseq
        %v1625 = vshrl.u32 %v1624, 7
        %v1626 = vsub.s32 1, %v1625
        %v1627 = vrot.slane %v1618, %v1626
        %v1628 = vlaneseq
        %v1629 = vshrl.u32 %v1628, 7
        %v1630 = vsub.s32 2, %v1629
        %v1631 = vrot.slane %v1618, %v1630
        %v1632 = vlaneseq
        %v1633 = vshrl.u32 %v1632, 7
        %v1634 = vsub.s32 3, %v1633
        %v1635 = vrot.slane %v1618, %v1634
        %v1636 = vlaneseq
        %v1637 = vshrl.u32 %v1636, 7
        %v1638 = vsub.s32 4, %v1637
        %v1639 = vrot.slane %v1618, %v1638
        %v1640 = vlaneseq
        %v1641 = vshrl.u32 %v1640, 7
        %v1642 = vsub.s32 5, %v1641
        %v1643 = vrot.slane %v1618, %v1642
        %v1644 = vlaneseq
        %v1645 = vshrl.u32 %v1644, 7
        %v1646 = vsub.s32 6, %v1645
        %v1647 = vrot.slane %v1618, %v1646
        %v1648 = vlaneseq
        %v1649 = vshrl.u32 %v1648, 7
        %v1650 = vsub.s32 7, %v1649
        %v1651 = vrot.slane %v1618, %v1650
        %v1660 = vsub.f32 %v1532, %v1623
        %v1661 = vsub.f32 %v1533, %v1627
        %v1662 = vsub.f32 %v1534, %v1631
        %v1663 = vsub.f32 %v1535, %v1635
        %v1664 = vsub.f32 %v1536, %v1639
        %v1665 = vsub.f32 %v1537, %v1643
        %v1666 = vsub.f32 %v1538, %v1647
        %v1667 = vsub.f32 %v1539, %v1651
        %v1668 = vmul.f32 %v1660, 1.442695
        %v1669 = vpow.pop %v1668
        %v1670 = vmul.f32 %v1661, 1.442695
        %v1671 = vpow.pop %v1670
        %v1672 = vmul.f32 %v1662, 1.442695
        %v1673 = vpow.pop %v1672
        %v1674 = vmul.f32 %v1663, 1.442695
        %v1675 = vpow.pop %v1674
        %v1676 = vmul.f32 %v1664, 1.442695
        %v1677 = vpow.pop %v1676
        %v1678 = vmul.f32 %v1665, 1.442695
        %v1679 = vpow.pop %v1678
        %v1680 = vmul.f32 %v1666, 1.442695
        %v1681 = vpow.pop %v1680
        %v1682 = vmul.f32 %v1667, 1.442695
        %v1683 = vpow.pop %v1682
        %1692 = vset.pattern.permute.xlu0 0
        %1693 = vperm.xlu0 %1692, %v1669
        %v1694 = vpop.permute.xlu0 %1693
        %1695 = vset.pattern.permute.xlu0 0
        %1696 = vperm.xlu0 %1695, %v1671
        %v1697 = vpop.permute.xlu0 %1696
        %1698 = vset.pattern.permute.xlu0 0
        %1699 = vperm.xlu0 %1698, %v1673
        %v1700 = vpop.permute.xlu0 %1699
        %1701 = vset.pattern.permute.xlu0 0
        %1702 = vperm.xlu0 %1701, %v1675
        %v1703 = vpop.permute.xlu0 %1702
        %1704 = vset.pattern.permute.xlu0 0
        %1705 = vperm.xlu0 %1704, %v1677
        %v1706 = vpop.permute.xlu0 %1705
        %1707 = vset.pattern.permute.xlu0 0
        %1708 = vperm.xlu0 %1707, %v1679
        %v1709 = vpop.permute.xlu0 %1708
        %1710 = vset.pattern.permute.xlu0 0
        %1711 = vperm.xlu0 %1710, %v1681
        %v1712 = vpop.permute.xlu0 %1711
        %1713 = vset.pattern.permute.xlu0 0
        %1714 = vperm.xlu0 %1713, %v1683
        %v1715 = vpop.permute.xlu0 %1714
        %v1716 = vlaneseq
        %v1717 = vshrl.u32 %v1716, 7
        %v1718 = vsub.s32 %v905, %v1717
        %v1719 = vrot.slane %v1694, %v1718
        %v1720 = vlaneseq
        %v1721 = vshrl.u32 %v1720, 7
        %v1722 = vsub.s32 %v905, %v1721
        %v1723 = vrot.slane %v1697, %v1722
        %v1724 = vlaneseq
        %v1725 = vshrl.u32 %v1724, 7
        %v1726 = vsub.s32 %v905, %v1725
        %v1727 = vrot.slane %v1700, %v1726
        %v1728 = vlaneseq
        %v1729 = vshrl.u32 %v1728, 7
        %v1730 = vsub.s32 %v905, %v1729
        %v1731 = vrot.slane %v1703, %v1730
        %v1732 = vlaneseq
        %v1733 = vshrl.u32 %v1732, 7
        %v1734 = vsub.s32 %v905, %v1733
        %v1735 = vrot.slane %v1706, %v1734
        %v1736 = vlaneseq
        %v1737 = vshrl.u32 %v1736, 7
        %v1738 = vsub.s32 %v905, %v1737
        %v1739 = vrot.slane %v1709, %v1738
        %v1740 = vlaneseq
        %v1741 = vshrl.u32 %v1740, 7
        %v1742 = vsub.s32 %v905, %v1741
        %v1743 = vrot.slane %v1712, %v1742
        %v1744 = vlaneseq
        %v1745 = vshrl.u32 %v1744, 7
        %v1746 = vsub.s32 %v905, %v1745
        %v1747 = vrot.slane %v1715, %v1746
        %v1748 = vsel %vm922, %v1723, %v1719
        %v1749 = vsel %vm924, %v1727, %v1748
        %v1750 = vsel %vm926, %v1731, %v1749
        %v1751 = vsel %vm1607, %v1735, %v1750
        %v1752 = vsel %vm1609, %v1739, %v1751
        %v1753 = vsel %vm1611, %v1743, %v1752
        %v1754 = vsel %vm1613, %v1747, %v1753
        %v1756 = vsel %vm613, %v1754, 0.0
        %1757 = vadd.xlane.f32.xlu0 %v1756
        %v1758 = vpop.xlane.xlu0 %1757
        %v1759 = vrcp.pop %v1758
        %v1761 = vlaneseq
        %v1762 = vshrl.u32 %v1761, 7
        %v1763 = vsub.s32 0, %v1762
        %v1764 = vrot.slane %v1759, %v1763
        %v1765 = vlaneseq
        %v1766 = vshrl.u32 %v1765, 7
        %v1767 = vsub.s32 1, %v1766
        %v1768 = vrot.slane %v1759, %v1767
        %v1769 = vlaneseq
        %v1770 = vshrl.u32 %v1769, 7
        %v1771 = vsub.s32 2, %v1770
        %v1772 = vrot.slane %v1759, %v1771
        %v1773 = vlaneseq
        %v1774 = vshrl.u32 %v1773, 7
        %v1775 = vsub.s32 3, %v1774
        %v1776 = vrot.slane %v1759, %v1775
        %v1777 = vlaneseq
        %v1778 = vshrl.u32 %v1777, 7
        %v1779 = vsub.s32 4, %v1778
        %v1780 = vrot.slane %v1759, %v1779
        %v1781 = vlaneseq
        %v1782 = vshrl.u32 %v1781, 7
        %v1783 = vsub.s32 5, %v1782
        %v1784 = vrot.slane %v1759, %v1783
        %v1785 = vlaneseq
        %v1786 = vshrl.u32 %v1785, 7
        %v1787 = vsub.s32 6, %v1786
        %v1788 = vrot.slane %v1759, %v1787
        %v1789 = vlaneseq
        %v1790 = vshrl.u32 %v1789, 7
        %v1791 = vsub.s32 7, %v1790
        %v1792 = vrot.slane %v1759, %v1791
        %v1801 = vmul.f32 %v1669, %v1764
        %v1802 = vmul.f32 %v1671, %v1768
        %v1803 = vmul.f32 %v1673, %v1772
        %v1804 = vmul.f32 %v1675, %v1776
        %v1805 = vmul.f32 %v1677, %v1780
        %v1806 = vmul.f32 %v1679, %v1784
        %v1807 = vmul.f32 %v1681, %v1788
        %v1808 = vmul.f32 %v1683, %v1792
        %1817 = vset.pattern.permute.xlu0 0
        %1818 = vperm.xlu0 %1817, %v1801
        %v1819 = vpop.permute.xlu0 %1818
        %1820 = vset.pattern.permute.xlu0 0
        %1821 = vperm.xlu0 %1820, %v1802
        %v1822 = vpop.permute.xlu0 %1821
        %1823 = vset.pattern.permute.xlu0 0
        %1824 = vperm.xlu0 %1823, %v1803
        %v1825 = vpop.permute.xlu0 %1824
        %1826 = vset.pattern.permute.xlu0 0
        %1827 = vperm.xlu0 %1826, %v1804
        %v1828 = vpop.permute.xlu0 %1827
        %1829 = vset.pattern.permute.xlu0 0
        %1830 = vperm.xlu0 %1829, %v1805
        %v1831 = vpop.permute.xlu0 %1830
        %1832 = vset.pattern.permute.xlu0 0
        %1833 = vperm.xlu0 %1832, %v1806
        %v1834 = vpop.permute.xlu0 %1833
        %1835 = vset.pattern.permute.xlu0 0
        %1836 = vperm.xlu0 %1835, %v1807
        %v1837 = vpop.permute.xlu0 %1836
        %1838 = vset.pattern.permute.xlu0 0
        %1839 = vperm.xlu0 %1838, %v1808
        %v1840 = vpop.permute.xlu0 %1839
        %v1841 = vlaneseq
        %v1842 = vshrl.u32 %v1841, 7
        %v1843 = vsub.s32 %v905, %v1842
        %v1844 = vrot.slane %v1819, %v1843
        %v1845 = vlaneseq
        %v1846 = vshrl.u32 %v1845, 7
        %v1847 = vsub.s32 %v905, %v1846
        %v1848 = vrot.slane %v1822, %v1847
        %v1849 = vlaneseq
        %v1850 = vshrl.u32 %v1849, 7
        %v1851 = vsub.s32 %v905, %v1850
        %v1852 = vrot.slane %v1825, %v1851
        %v1853 = vlaneseq
        %v1854 = vshrl.u32 %v1853, 7
        %v1855 = vsub.s32 %v905, %v1854
        %v1856 = vrot.slane %v1828, %v1855
        %v1857 = vlaneseq
        %v1858 = vshrl.u32 %v1857, 7
        %v1859 = vsub.s32 %v905, %v1858
        %v1860 = vrot.slane %v1831, %v1859
        %v1861 = vlaneseq
        %v1862 = vshrl.u32 %v1861, 7
        %v1863 = vsub.s32 %v905, %v1862
        %v1864 = vrot.slane %v1834, %v1863
        %v1865 = vlaneseq
        %v1866 = vshrl.u32 %v1865, 7
        %v1867 = vsub.s32 %v905, %v1866
        %v1868 = vrot.slane %v1837, %v1867
        %v1869 = vlaneseq
        %v1870 = vshrl.u32 %v1869, 7
        %v1871 = vsub.s32 %v905, %v1870
        %v1872 = vrot.slane %v1840, %v1871
        %v1873 = vsel %vm922, %v1848, %v1844
        %v1874 = vsel %vm924, %v1852, %v1873
        %v1875 = vsel %vm926, %v1856, %v1874
        %v1876 = vsel %vm1607, %v1860, %v1875
        %v1877 = vsel %vm1609, %v1864, %v1876
        %v1878 = vsel %vm1611, %v1868, %v1877
        %v1879 = vsel %vm1613, %v1872, %v1878
        %v1880 = vsel %vm613, %v1879, 0
        %1882 = vmatprep.subr.mxu0 0.0
        %1883 = vmatpush1.msra.mxu0 %v610
        %1884 = vmatprep.subr.mxu0 0.0
        %1885 = vmatpush1.msra.mxu0 0.0
        %1886 = vmatprep.subr.mxu0 0.0
        %1887 = vmatpush1.msra.mxu0 0.0
        %1888 = vmatprep.subr.mxu0 0.0
        %1889 = vmatpush1.msra.mxu0 0.0
        %1890 = vmatprep.subr.mxu0 0.0
        %1891 = vmatpush1.msra.mxu0 0.0
        %1892 = vmatprep.subr.mxu0 0.0
        %1893 = vmatpush1.msra.mxu0 0.0
        %1894 = vmatprep.subr.mxu0 0.0
        %1895 = vmatpush1.msra.mxu0 0.0
        %1896 = vmatprep.subr.mxu0 0.0
        %1897 = vmatpush1.msra.mxu0 0.0
        %1898 = vmatprep.subr.mxu0 0.0
        %1899 = vmatpush1.msra.mxu0 0.0
        %1900 = vmatprep.subr.mxu0 0.0
        %1901 = vmatpush1.msra.mxu0 0.0
        %1902 = vmatprep.subr.mxu0 0.0
        %1903 = vmatpush1.msra.mxu0 0.0
        %1904 = vmatprep.subr.mxu0 0.0
        %1905 = vmatpush1.msra.mxu0 0.0
        %1906 = vmatprep.subr.mxu0 0.0
        %1907 = vmatpush1.msra.mxu0 0.0
        %1908 = vmatprep.subr.mxu0 0.0
        %1909 = vmatpush1.msra.mxu0 0.0
        %1910 = vmatprep.subr.mxu0 0.0
        %1911 = vmatpush1.msra.mxu0 0.0
        %1912 = vmatprep.subr.mxu0 0.0
        %1913 = vmatpush1.msra.mxu0 0.0
        %1914 = vmatprep.subr.mxu0 0.0
        %1915 = vmatpush1.msra.mxu0 0.0
        %1916 = vmatprep.subr.mxu0 0.0
        %1917 = vmatpush1.msra.mxu0 0.0
        %1918 = vmatprep.subr.mxu0 0.0
        %1919 = vmatpush1.msra.mxu0 0.0
        %1920 = vmatprep.subr.mxu0 0.0
        %1921 = vmatpush1.msra.mxu0 0.0
        %1922 = vmatprep.subr.mxu0 0.0
        %1923 = vmatpush1.msra.mxu0 0.0
        %1924 = vmatprep.subr.mxu0 0.0
        %1925 = vmatpush1.msra.mxu0 0.0
        %1926 = vmatprep.subr.mxu0 0.0
        %1927 = vmatpush1.msra.mxu0 0.0
        %1928 = vmatprep.subr.mxu0 0.0
        %1929 = vmatpush1.msra.mxu0 0.0
        %1930 = vmatprep.subr.mxu0 0.0
        %1931 = vmatpush1.msra.mxu0 0.0
        %1932 = vmatprep.subr.mxu0 0.0
        %1933 = vmatpush1.msra.mxu0 0.0
        %1934 = vmatprep.subr.mxu0 0.0
        %1935 = vmatpush1.msra.mxu0 0.0
        %1936 = vmatprep.subr.mxu0 0.0
        %1937 = vmatpush1.msra.mxu0 0.0
        %1938 = vmatprep.subr.mxu0 0.0
        %1939 = vmatpush1.msra.mxu0 0.0
        %1940 = vmatprep.subr.mxu0 0.0
        %1941 = vmatpush1.msra.mxu0 0.0
        %1942 = vmatprep.subr.mxu0 0.0
        %1943 = vmatpush1.msra.mxu0 0.0
        %1944 = vmatprep.subr.mxu0 0.0
        %1945 = vmatpush1.msra.mxu0 0.0
        %1946 = vmatprep.mubr.f32.mxu0 0.0
        %1947 = vmatmul.mubr.f32.gmra.mrb[0].mxu0 %v1880
        %v1948 = vpop.f32.mrb[0].mxu0
        %v1949 = vadd.f32 0.0, %v1948
        %v1950 = vpop.f32.mrb[0].mxu0
        %1951 = vdwg.mxu0
        %v1952 = vxor.u32 %v1949, 2147483648
        %v1953 = vmul.f32 %v1952, 1.442695
        %v1954 = vpow.pop %v1953
        %v1955 = vadd.f32 %v1954, 1.0
        %v1956 = vrcp.pop %v1955
        %v1957 = vmul.f32 1.0, %v1956
        %v1958 = vadd.f32 %v1147, %v1957
        %v1959 = vld [vmem:[%s12] sm:$0xf]
        %v1960 = vld [vmem:[%s13] sm:$0xf]
        %v1962 = vsel %vm1066, %v1958, 0
        %v1965 = vsel %vm1149, %v1960, 0
        %1967 = vmatprep.subr.mxu0 0.0
        %1968 = vmatpush1.msra.mxu0 %v1965
        %1969 = vmatprep.subr.mxu0 0.0
        %1970 = vmatpush1.msra.mxu0 0.0
        %1971 = vmatprep.subr.mxu0 0.0
        %1972 = vmatpush1.msra.mxu0 0.0
        %1973 = vmatprep.subr.mxu0 0.0
        %1974 = vmatpush1.msra.mxu0 0.0
        %1975 = vmatprep.subr.mxu0 0.0
        %1976 = vmatpush1.msra.mxu0 0.0
        %1977 = vmatprep.subr.mxu0 0.0
        %1978 = vmatpush1.msra.mxu0 0.0
        %1979 = vmatprep.subr.mxu0 0.0
        %1980 = vmatpush1.msra.mxu0 0.0
        %1981 = vmatprep.subr.mxu0 0.0
        %1982 = vmatpush1.msra.mxu0 0.0
        %1983 = vmatprep.subr.mxu0 0.0
        %1984 = vmatpush1.msra.mxu0 0.0
        %1985 = vmatprep.subr.mxu0 0.0
        %1986 = vmatpush1.msra.mxu0 0.0
        %1987 = vmatprep.subr.mxu0 0.0
        %1988 = vmatpush1.msra.mxu0 0.0
        %1989 = vmatprep.subr.mxu0 0.0
        %1990 = vmatpush1.msra.mxu0 0.0
        %1991 = vmatprep.subr.mxu0 0.0
        %1992 = vmatpush1.msra.mxu0 0.0
        %1993 = vmatprep.subr.mxu0 0.0
        %1994 = vmatpush1.msra.mxu0 0.0
        %1995 = vmatprep.subr.mxu0 0.0
        %1996 = vmatpush1.msra.mxu0 0.0
        %1997 = vmatprep.subr.mxu0 0.0
        %1998 = vmatpush1.msra.mxu0 0.0
        %1999 = vmatprep.subr.mxu0 0.0
        %2000 = vmatpush1.msra.mxu0 0.0
        %2001 = vmatprep.subr.mxu0 0.0
        %2002 = vmatpush1.msra.mxu0 0.0
        %2003 = vmatprep.subr.mxu0 0.0
        %2004 = vmatpush1.msra.mxu0 0.0
        %2005 = vmatprep.subr.mxu0 0.0
        %2006 = vmatpush1.msra.mxu0 0.0
        %2007 = vmatprep.subr.mxu0 0.0
        %2008 = vmatpush1.msra.mxu0 0.0
        %2009 = vmatprep.subr.mxu0 0.0
        %2010 = vmatpush1.msra.mxu0 0.0
        %2011 = vmatprep.subr.mxu0 0.0
        %2012 = vmatpush1.msra.mxu0 0.0
        %2013 = vmatprep.subr.mxu0 0.0
        %2014 = vmatpush1.msra.mxu0 0.0
        %2015 = vmatprep.subr.mxu0 0.0
        %2016 = vmatpush1.msra.mxu0 0.0
        %2017 = vmatprep.subr.mxu0 0.0
        %2018 = vmatpush1.msra.mxu0 0.0
        %2019 = vmatprep.subr.mxu0 0.0
        %2020 = vmatpush1.msra.mxu0 0.0
        %2021 = vmatprep.subr.mxu0 0.0
        %2022 = vmatpush1.msra.mxu0 0.0
        %2023 = vmatprep.subr.mxu0 0.0
        %2024 = vmatpush1.msra.mxu0 0.0
        %2025 = vmatprep.subr.mxu0 0.0
        %2026 = vmatpush1.msra.mxu0 0.0
        %2027 = vmatprep.subr.mxu0 0.0
        %2028 = vmatpush1.msra.mxu0 0.0
        %2029 = vmatprep.subr.mxu0 0.0
        %2030 = vmatpush1.msra.mxu0 0.0
        %2031 = vmatprep.mubr.f32.mxu0 0.0
        %2032 = vmatmul.mubr.f32.gmra.mrb[0].mxu0 %v1962
        %v2033 = vpop.f32.mrb[0].mxu0
        %v2034 = vadd.f32 0.0, %v2033
        %v2035 = vpop.f32.mrb[0].mxu0
        %2036 = vdwg.mxu0
        %v2038 = vsel %vm1149, %v1959, 0
        %2040 = vmatprep.subr.mxu0 0.0
        %2041 = vmatpush1.msra.mxu0 %v2038
        %2042 = vmatprep.subr.mxu0 0.0
        %2043 = vmatpush1.msra.mxu0 0.0
        %2044 = vmatprep.subr.mxu0 0.0
        %2045 = vmatpush1.msra.mxu0 0.0
        %2046 = vmatprep.subr.mxu0 0.0
        %2047 = vmatpush1.msra.mxu0 0.0
        %2048 = vmatprep.subr.mxu0 0.0
        %2049 = vmatpush1.msra.mxu0 0.0
        %2050 = vmatprep.subr.mxu0 0.0
        %2051 = vmatpush1.msra.mxu0 0.0
        %2052 = vmatprep.subr.mxu0 0.0
        %2053 = vmatpush1.msra.mxu0 0.0
        %2054 = vmatprep.subr.mxu0 0.0
        %2055 = vmatpush1.msra.mxu0 0.0
        %2056 = vmatprep.subr.mxu0 0.0
        %2057 = vmatpush1.msra.mxu0 0.0
        %2058 = vmatprep.subr.mxu0 0.0
        %2059 = vmatpush1.msra.mxu0 0.0
        %2060 = vmatprep.subr.mxu0 0.0
        %2061 = vmatpush1.msra.mxu0 0.0
        %2062 = vmatprep.subr.mxu0 0.0
        %2063 = vmatpush1.msra.mxu0 0.0
        %2064 = vmatprep.subr.mxu0 0.0
        %2065 = vmatpush1.msra.mxu0 0.0
        %2066 = vmatprep.subr.mxu0 0.0
        %2067 = vmatpush1.msra.mxu0 0.0
        %2068 = vmatprep.subr.mxu0 0.0
        %2069 = vmatpush1.msra.mxu0 0.0
        %2070 = vmatprep.subr.mxu0 0.0
        %2071 = vmatpush1.msra.mxu0 0.0
        %2072 = vmatprep.subr.mxu0 0.0
        %2073 = vmatpush1.msra.mxu0 0.0
        %2074 = vmatprep.subr.mxu0 0.0
        %2075 = vmatpush1.msra.mxu0 0.0
        %2076 = vmatprep.subr.mxu0 0.0
        %2077 = vmatpush1.msra.mxu0 0.0
        %2078 = vmatprep.subr.mxu0 0.0
        %2079 = vmatpush1.msra.mxu0 0.0
        %2080 = vmatprep.subr.mxu0 0.0
        %2081 = vmatpush1.msra.mxu0 0.0
        %2082 = vmatprep.subr.mxu0 0.0
        %2083 = vmatpush1.msra.mxu0 0.0
        %2084 = vmatprep.subr.mxu0 0.0
        %2085 = vmatpush1.msra.mxu0 0.0
        %2086 = vmatprep.subr.mxu0 0.0
        %2087 = vmatpush1.msra.mxu0 0.0
        %2088 = vmatprep.subr.mxu0 0.0
        %2089 = vmatpush1.msra.mxu0 0.0
        %2090 = vmatprep.subr.mxu0 0.0
        %2091 = vmatpush1.msra.mxu0 0.0
        %2092 = vmatprep.subr.mxu0 0.0
        %2093 = vmatpush1.msra.mxu0 0.0
        %2094 = vmatprep.subr.mxu0 0.0
        %2095 = vmatpush1.msra.mxu0 0.0
        %2096 = vmatprep.subr.mxu0 0.0
        %2097 = vmatpush1.msra.mxu0 0.0
        %2098 = vmatprep.subr.mxu0 0.0
        %2099 = vmatpush1.msra.mxu0 0.0
        %2100 = vmatprep.subr.mxu0 0.0
        %2101 = vmatpush1.msra.mxu0 0.0
        %2102 = vmatprep.subr.mxu0 0.0
        %2103 = vmatpush1.msra.mxu0 0.0
        %2104 = vmatprep.mubr.f32.mxu0 0.0
        %2105 = vmatmul.mubr.f32.gmra.mrb[0].mxu0 %v1068
        %v2106 = vpop.f32.mrb[0].mxu0
        %v2107 = vadd.f32 %v2034, %v2106
        %v2108 = vpop.f32.mrb[0].mxu0
        %2109 = vdwg.mxu0
        %s2110 = scalar_lea.vmem %s12, 4
        %v2111 = vld [vmem:[%s2110] sm:$0xf]
        %s2112 = scalar_lea.vmem %s13, 4
        %v2113 = vld [vmem:[%s2112] sm:$0xf]
        %v2115 = vsel %vm1149, %v2113, 0
        %2117 = vmatprep.subr.mxu0 0.0
        %2118 = vmatpush1.msra.mxu0 %v2115
        %2119 = vmatprep.subr.mxu0 0.0
        %2120 = vmatpush1.msra.mxu0 0.0
        %2121 = vmatprep.subr.mxu0 0.0
        %2122 = vmatpush1.msra.mxu0 0.0
        %2123 = vmatprep.subr.mxu0 0.0
        %2124 = vmatpush1.msra.mxu0 0.0
        %2125 = vmatprep.subr.mxu0 0.0
        %2126 = vmatpush1.msra.mxu0 0.0
        %2127 = vmatprep.subr.mxu0 0.0
        %2128 = vmatpush1.msra.mxu0 0.0
        %2129 = vmatprep.subr.mxu0 0.0
        %2130 = vmatpush1.msra.mxu0 0.0
        %2131 = vmatprep.subr.mxu0 0.0
        %2132 = vmatpush1.msra.mxu0 0.0
        %2133 = vmatprep.subr.mxu0 0.0
        %2134 = vmatpush1.msra.mxu0 0.0
        %2135 = vmatprep.subr.mxu0 0.0
        %2136 = vmatpush1.msra.mxu0 0.0
        %2137 = vmatprep.subr.mxu0 0.0
        %2138 = vmatpush1.msra.mxu0 0.0
        %2139 = vmatprep.subr.mxu0 0.0
        %2140 = vmatpush1.msra.mxu0 0.0
        %2141 = vmatprep.subr.mxu0 0.0
        %2142 = vmatpush1.msra.mxu0 0.0
        %2143 = vmatprep.subr.mxu0 0.0
        %2144 = vmatpush1.msra.mxu0 0.0
        %2145 = vmatprep.subr.mxu0 0.0
        %2146 = vmatpush1.msra.mxu0 0.0
        %2147 = vmatprep.subr.mxu0 0.0
        %2148 = vmatpush1.msra.mxu0 0.0
        %2149 = vmatprep.subr.mxu0 0.0
        %2150 = vmatpush1.msra.mxu0 0.0
        %2151 = vmatprep.subr.mxu0 0.0
        %2152 = vmatpush1.msra.mxu0 0.0
        %2153 = vmatprep.subr.mxu0 0.0
        %2154 = vmatpush1.msra.mxu0 0.0
        %2155 = vmatprep.subr.mxu0 0.0
        %2156 = vmatpush1.msra.mxu0 0.0
        %2157 = vmatprep.subr.mxu0 0.0
        %2158 = vmatpush1.msra.mxu0 0.0
        %2159 = vmatprep.subr.mxu0 0.0
        %2160 = vmatpush1.msra.mxu0 0.0
        %2161 = vmatprep.subr.mxu0 0.0
        %2162 = vmatpush1.msra.mxu0 0.0
        %2163 = vmatprep.subr.mxu0 0.0
        %2164 = vmatpush1.msra.mxu0 0.0
        %2165 = vmatprep.subr.mxu0 0.0
        %2166 = vmatpush1.msra.mxu0 0.0
        %2167 = vmatprep.subr.mxu0 0.0
        %2168 = vmatpush1.msra.mxu0 0.0
        %2169 = vmatprep.subr.mxu0 0.0
        %2170 = vmatpush1.msra.mxu0 0.0
        %2171 = vmatprep.subr.mxu0 0.0
        %2172 = vmatpush1.msra.mxu0 0.0
        %2173 = vmatprep.subr.mxu0 0.0
        %2174 = vmatpush1.msra.mxu0 0.0
        %2175 = vmatprep.subr.mxu0 0.0
        %2176 = vmatpush1.msra.mxu0 0.0
        %2177 = vmatprep.subr.mxu0 0.0
        %2178 = vmatpush1.msra.mxu0 0.0
        %2179 = vmatprep.subr.mxu0 0.0
        %2180 = vmatpush1.msra.mxu0 0.0
        %2181 = vmatprep.mubr.f32.mxu0 0.0
        %2182 = vmatmul.mubr.f32.gmra.mrb[0].mxu0 %v1962
        %v2183 = vpop.f32.mrb[0].mxu0
        %v2184 = vadd.f32 0.0, %v2183
        %v2185 = vpop.f32.mrb[0].mxu0
        %2186 = vdwg.mxu0
        %v2188 = vsel %vm1149, %v2111, 0
        %2190 = vmatprep.subr.mxu0 0.0
        %2191 = vmatpush1.msra.mxu0 %v2188
        %2192 = vmatprep.subr.mxu0 0.0
        %2193 = vmatpush1.msra.mxu0 0.0
        %2194 = vmatprep.subr.mxu0 0.0
        %2195 = vmatpush1.msra.mxu0 0.0
        %2196 = vmatprep.subr.mxu0 0.0
        %2197 = vmatpush1.msra.mxu0 0.0
        %2198 = vmatprep.subr.mxu0 0.0
        %2199 = vmatpush1.msra.mxu0 0.0
        %2200 = vmatprep.subr.mxu0 0.0
        %2201 = vmatpush1.msra.mxu0 0.0
        %2202 = vmatprep.subr.mxu0 0.0
        %2203 = vmatpush1.msra.mxu0 0.0
        %2204 = vmatprep.subr.mxu0 0.0
        %2205 = vmatpush1.msra.mxu0 0.0
        %2206 = vmatprep.subr.mxu0 0.0
        %2207 = vmatpush1.msra.mxu0 0.0
        %2208 = vmatprep.subr.mxu0 0.0
        %2209 = vmatpush1.msra.mxu0 0.0
        %2210 = vmatprep.subr.mxu0 0.0
        %2211 = vmatpush1.msra.mxu0 0.0
        %2212 = vmatprep.subr.mxu0 0.0
        %2213 = vmatpush1.msra.mxu0 0.0
        %2214 = vmatprep.subr.mxu0 0.0
        %2215 = vmatpush1.msra.mxu0 0.0
        %2216 = vmatprep.subr.mxu0 0.0
        %2217 = vmatpush1.msra.mxu0 0.0
        %2218 = vmatprep.subr.mxu0 0.0
        %2219 = vmatpush1.msra.mxu0 0.0
        %2220 = vmatprep.subr.mxu0 0.0
        %2221 = vmatpush1.msra.mxu0 0.0
        %2222 = vmatprep.subr.mxu0 0.0
        %2223 = vmatpush1.msra.mxu0 0.0
        %2224 = vmatprep.subr.mxu0 0.0
        %2225 = vmatpush1.msra.mxu0 0.0
        %2226 = vmatprep.subr.mxu0 0.0
        %2227 = vmatpush1.msra.mxu0 0.0
        %2228 = vmatprep.subr.mxu0 0.0
        %2229 = vmatpush1.msra.mxu0 0.0
        %2230 = vmatprep.subr.mxu0 0.0
        %2231 = vmatpush1.msra.mxu0 0.0
        %2232 = vmatprep.subr.mxu0 0.0
        %2233 = vmatpush1.msra.mxu0 0.0
        %2234 = vmatprep.subr.mxu0 0.0
        %2235 = vmatpush1.msra.mxu0 0.0
        %2236 = vmatprep.subr.mxu0 0.0
        %2237 = vmatpush1.msra.mxu0 0.0
        %2238 = vmatprep.subr.mxu0 0.0
        %2239 = vmatpush1.msra.mxu0 0.0
        %2240 = vmatprep.subr.mxu0 0.0
        %2241 = vmatpush1.msra.mxu0 0.0
        %2242 = vmatprep.subr.mxu0 0.0
        %2243 = vmatpush1.msra.mxu0 0.0
        %2244 = vmatprep.subr.mxu0 0.0
        %2245 = vmatpush1.msra.mxu0 0.0
        %2246 = vmatprep.subr.mxu0 0.0
        %2247 = vmatpush1.msra.mxu0 0.0
        %2248 = vmatprep.subr.mxu0 0.0
        %2249 = vmatpush1.msra.mxu0 0.0
        %2250 = vmatprep.subr.mxu0 0.0
        %2251 = vmatpush1.msra.mxu0 0.0
        %2252 = vmatprep.subr.mxu0 0.0
        %2253 = vmatpush1.msra.mxu0 0.0
        %2254 = vmatprep.mubr.f32.mxu0 0.0
        %2255 = vmatmul.mubr.f32.gmra.mrb[0].mxu0 %v1068
        %v2256 = vpop.f32.mrb[0].mxu0
        %v2257 = vadd.f32 %v2184, %v2256
        %v2258 = vpop.f32.mrb[0].mxu0
        %2259 = vdwg.mxu0
        %s2260 = scalar_lea.vmem %s12, 8
        %v2261 = vld [vmem:[%s2260] sm:$0xf]
        %s2262 = scalar_lea.vmem %s13, 8
        %v2263 = vld [vmem:[%s2262] sm:$0xf]
        %v2265 = vsel %vm1149, %v2263, 0
        %2267 = vmatprep.subr.mxu0 0.0
        %2268 = vmatpush1.msra.mxu0 %v2265
        %2269 = vmatprep.subr.mxu0 0.0
        %2270 = vmatpush1.msra.mxu0 0.0
        %2271 = vmatprep.subr.mxu0 0.0
        %2272 = vmatpush1.msra.mxu0 0.0
        %2273 = vmatprep.subr.mxu0 0.0
        %2274 = vmatpush1.msra.mxu0 0.0
        %2275 = vmatprep.subr.mxu0 0.0
        %2276 = vmatpush1.msra.mxu0 0.0
        %2277 = vmatprep.subr.mxu0 0.0
        %2278 = vmatpush1.msra.mxu0 0.0
        %2279 = vmatprep.subr.mxu0 0.0
        %2280 = vmatpush1.msra.mxu0 0.0
        %2281 = vmatprep.subr.mxu0 0.0
        %2282 = vmatpush1.msra.mxu0 0.0
        %2283 = vmatprep.subr.mxu0 0.0
        %2284 = vmatpush1.msra.mxu0 0.0
        %2285 = vmatprep.subr.mxu0 0.0
        %2286 = vmatpush1.msra.mxu0 0.0
        %2287 = vmatprep.subr.mxu0 0.0
        %2288 = vmatpush1.msra.mxu0 0.0
        %2289 = vmatprep.subr.mxu0 0.0
        %2290 = vmatpush1.msra.mxu0 0.0
        %2291 = vmatprep.subr.mxu0 0.0
        %2292 = vmatpush1.msra.mxu0 0.0
        %2293 = vmatprep.subr.mxu0 0.0
        %2294 = vmatpush1.msra.mxu0 0.0
        %2295 = vmatprep.subr.mxu0 0.0
        %2296 = vmatpush1.msra.mxu0 0.0
        %2297 = vmatprep.subr.mxu0 0.0
        %2298 = vmatpush1.msra.mxu0 0.0
        %2299 = vmatprep.subr.mxu0 0.0
        %2300 = vmatpush1.msra.mxu0 0.0
        %2301 = vmatprep.subr.mxu0 0.0
        %2302 = vmatpush1.msra.mxu0 0.0
        %2303 = vmatprep.subr.mxu0 0.0
        %2304 = vmatpush1.msra.mxu0 0.0
        %2305 = vmatprep.subr.mxu0 0.0
        %2306 = vmatpush1.msra.mxu0 0.0
        %2307 = vmatprep.subr.mxu0 0.0
        %2308 = vmatpush1.msra.mxu0 0.0
        %2309 = vmatprep.subr.mxu0 0.0
        %2310 = vmatpush1.msra.mxu0 0.0
        %2311 = vmatprep.subr.mxu0 0.0
        %2312 = vmatpush1.msra.mxu0 0.0
        %2313 = vmatprep.subr.mxu0 0.0
        %2314 = vmatpush1.msra.mxu0 0.0
        %2315 = vmatprep.subr.mxu0 0.0
        %2316 = vmatpush1.msra.mxu0 0.0
        %2317 = vmatprep.subr.mxu0 0.0
        %2318 = vmatpush1.msra.mxu0 0.0
        %2319 = vmatprep.subr.mxu0 0.0
        %2320 = vmatpush1.msra.mxu0 0.0
        %2321 = vmatprep.subr.mxu0 0.0
        %2322 = vmatpush1.msra.mxu0 0.0
        %2323 = vmatprep.subr.mxu0 0.0
        %2324 = vmatpush1.msra.mxu0 0.0
        %2325 = vmatprep.subr.mxu0 0.0
        %2326 = vmatpush1.msra.mxu0 0.0
        %2327 = vmatprep.subr.mxu0 0.0
        %2328 = vmatpush1.msra.mxu0 0.0
        %2329 = vmatprep.subr.mxu0 0.0
        %2330 = vmatpush1.msra.mxu0 0.0
        %2331 = vmatprep.mubr.f32.mxu0 0.0
        %2332 = vmatmul.mubr.f32.gmra.mrb[0].mxu0 %v1962
        %v2333 = vpop.f32.mrb[0].mxu0
        %v2334 = vadd.f32 0.0, %v2333
        %v2335 = vpop.f32.mrb[0].mxu0
        %2336 = vdwg.mxu0
        %v2338 = vsel %vm1149, %v2261, 0
        %2340 = vmatprep.subr.mxu0 0.0
        %2341 = vmatpush1.msra.mxu0 %v2338
        %2342 = vmatprep.subr.mxu0 0.0
        %2343 = vmatpush1.msra.mxu0 0.0
        %2344 = vmatprep.subr.mxu0 0.0
        %2345 = vmatpush1.msra.mxu0 0.0
        %2346 = vmatprep.subr.mxu0 0.0
        %2347 = vmatpush1.msra.mxu0 0.0
        %2348 = vmatprep.subr.mxu0 0.0
        %2349 = vmatpush1.msra.mxu0 0.0
        %2350 = vmatprep.subr.mxu0 0.0
        %2351 = vmatpush1.msra.mxu0 0.0
        %2352 = vmatprep.subr.mxu0 0.0
        %2353 = vmatpush1.msra.mxu0 0.0
        %2354 = vmatprep.subr.mxu0 0.0
        %2355 = vmatpush1.msra.mxu0 0.0
        %2356 = vmatprep.subr.mxu0 0.0
        %2357 = vmatpush1.msra.mxu0 0.0
        %2358 = vmatprep.subr.mxu0 0.0
        %2359 = vmatpush1.msra.mxu0 0.0
        %2360 = vmatprep.subr.mxu0 0.0
        %2361 = vmatpush1.msra.mxu0 0.0
        %2362 = vmatprep.subr.mxu0 0.0
        %2363 = vmatpush1.msra.mxu0 0.0
        %2364 = vmatprep.subr.mxu0 0.0
        %2365 = vmatpush1.msra.mxu0 0.0
        %2366 = vmatprep.subr.mxu0 0.0
        %2367 = vmatpush1.msra.mxu0 0.0
        %2368 = vmatprep.subr.mxu0 0.0
        %2369 = vmatpush1.msra.mxu0 0.0
        %2370 = vmatprep.subr.mxu0 0.0
        %2371 = vmatpush1.msra.mxu0 0.0
        %2372 = vmatprep.subr.mxu0 0.0
        %2373 = vmatpush1.msra.mxu0 0.0
        %2374 = vmatprep.subr.mxu0 0.0
        %2375 = vmatpush1.msra.mxu0 0.0
        %2376 = vmatprep.subr.mxu0 0.0
        %2377 = vmatpush1.msra.mxu0 0.0
        %2378 = vmatprep.subr.mxu0 0.0
        %2379 = vmatpush1.msra.mxu0 0.0
        %2380 = vmatprep.subr.mxu0 0.0
        %2381 = vmatpush1.msra.mxu0 0.0
        %2382 = vmatprep.subr.mxu0 0.0
        %2383 = vmatpush1.msra.mxu0 0.0
        %2384 = vmatprep.subr.mxu0 0.0
        %2385 = vmatpush1.msra.mxu0 0.0
        %2386 = vmatprep.subr.mxu0 0.0
        %2387 = vmatpush1.msra.mxu0 0.0
        %2388 = vmatprep.subr.mxu0 0.0
        %2389 = vmatpush1.msra.mxu0 0.0
        %2390 = vmatprep.subr.mxu0 0.0
        %2391 = vmatpush1.msra.mxu0 0.0
        %2392 = vmatprep.subr.mxu0 0.0
        %2393 = vmatpush1.msra.mxu0 0.0
        %2394 = vmatprep.subr.mxu0 0.0
        %2395 = vmatpush1.msra.mxu0 0.0
        %2396 = vmatprep.subr.mxu0 0.0
        %2397 = vmatpush1.msra.mxu0 0.0
        %2398 = vmatprep.subr.mxu0 0.0
        %2399 = vmatpush1.msra.mxu0 0.0
        %2400 = vmatprep.subr.mxu0 0.0
        %2401 = vmatpush1.msra.mxu0 0.0
        %2402 = vmatprep.subr.mxu0 0.0
        %2403 = vmatpush1.msra.mxu0 0.0
        %2404 = vmatprep.mubr.f32.mxu0 0.0
        %2405 = vmatmul.mubr.f32.gmra.mrb[0].mxu0 %v1068
        %v2406 = vpop.f32.mrb[0].mxu0
        %v2407 = vadd.f32 %v2334, %v2406
        %v2408 = vpop.f32.mrb[0].mxu0
        %2409 = vdwg.mxu0
        %v2410 = vld [vmem:[#allocation10] sm:$0xff]
        %v2412 = vsel %vm613, %v2410, 0
        %2414 = vmatprep.subr.mxu0 0.0
        %2415 = vmatpush1.msra.mxu0 %v2107
        %2416 = vmatprep.subr.mxu0 0.0
        %2417 = vmatpush1.msra.mxu0 0.0
        %2418 = vmatprep.subr.mxu0 0.0
        %2419 = vmatpush1.msra.mxu0 0.0
        %2420 = vmatprep.subr.mxu0 0.0
        %2421 = vmatpush1.msra.mxu0 0.0
        %2422 = vmatprep.subr.mxu0 0.0
        %2423 = vmatpush1.msra.mxu0 0.0
        %2424 = vmatprep.subr.mxu0 0.0
        %2425 = vmatpush1.msra.mxu0 0.0
        %2426 = vmatprep.subr.mxu0 0.0
        %2427 = vmatpush1.msra.mxu0 0.0
        %2428 = vmatprep.subr.mxu0 0.0
        %2429 = vmatpush1.msra.mxu0 0.0
        %2430 = vmatprep.subr.mxu0 0.0
        %2431 = vmatpush1.msra.mxu0 0.0
        %2432 = vmatprep.subr.mxu0 0.0
        %2433 = vmatpush1.msra.mxu0 0.0
        %2434 = vmatprep.subr.mxu0 0.0
        %2435 = vmatpush1.msra.mxu0 0.0
        %2436 = vmatprep.subr.mxu0 0.0
        %2437 = vmatpush1.msra.mxu0 0.0
        %2438 = vmatprep.subr.mxu0 0.0
        %2439 = vmatpush1.msra.mxu0 0.0
        %2440 = vmatprep.subr.mxu0 0.0
        %2441 = vmatpush1.msra.mxu0 0.0
        %2442 = vmatprep.subr.mxu0 0.0
        %2443 = vmatpush1.msra.mxu0 0.0
        %2444 = vmatprep.subr.mxu0 0.0
        %2445 = vmatpush1.msra.mxu0 0.0
        %2446 = vmatprep.subr.mxu0 0.0
        %2447 = vmatpush1.msra.mxu0 0.0
        %2448 = vmatprep.subr.mxu0 0.0
        %2449 = vmatpush1.msra.mxu0 0.0
        %2450 = vmatprep.subr.mxu0 0.0
        %2451 = vmatpush1.msra.mxu0 0.0
        %2452 = vmatprep.subr.mxu0 0.0
        %2453 = vmatpush1.msra.mxu0 0.0
        %2454 = vmatprep.subr.mxu0 0.0
        %2455 = vmatpush1.msra.mxu0 0.0
        %2456 = vmatprep.subr.mxu0 0.0
        %2457 = vmatpush1.msra.mxu0 0.0
        %2458 = vmatprep.subr.mxu0 0.0
        %2459 = vmatpush1.msra.mxu0 0.0
        %2460 = vmatprep.subr.mxu0 0.0
        %2461 = vmatpush1.msra.mxu0 0.0
        %2462 = vmatprep.subr.mxu0 0.0
        %2463 = vmatpush1.msra.mxu0 0.0
        %2464 = vmatprep.subr.mxu0 0.0
        %2465 = vmatpush1.msra.mxu0 0.0
        %2466 = vmatprep.subr.mxu0 0.0
        %2467 = vmatpush1.msra.mxu0 0.0
        %2468 = vmatprep.subr.mxu0 0.0
        %2469 = vmatpush1.msra.mxu0 0.0
        %2470 = vmatprep.subr.mxu0 0.0
        %2471 = vmatpush1.msra.mxu0 0.0
        %2472 = vmatprep.subr.mxu0 0.0
        %2473 = vmatpush1.msra.mxu0 0.0
        %2474 = vmatprep.subr.mxu0 0.0
        %2475 = vmatpush1.msra.mxu0 0.0
        %2476 = vmatprep.subr.mxu0 0.0
        %2477 = vmatpush1.msra.mxu0 0.0
        %2478 = vmatprep.mubr.f32.mxu0 0.0
        %2479 = vmatmul.mubr.f32.gmra.mrb[0].mxu0 %v2412
        %v2480 = vpop.f32.mrb[0].mxu0
        %v2481 = vadd.f32 %v2257, %v2480
        %v2482 = vpop.f32.mrb[0].mxu0
        %2483 = vdwg.mxu0
        %v2484 = vld [vmem:[#allocation11] sm:$0xff]
        %v2486 = vsel %vm613, %v2484, 0
        %2488 = vmatprep.subr.mxu0 0.0
        %2489 = vmatpush1.msra.mxu0 %v2407
        %2490 = vmatprep.subr.mxu0 0.0
        %2491 = vmatpush1.msra.mxu0 0.0
        %2492 = vmatprep.subr.mxu0 0.0
        %2493 = vmatpush1.msra.mxu0 0.0
        %2494 = vmatprep.subr.mxu0 0.0
        %2495 = vmatpush1.msra.mxu0 0.0
        %2496 = vmatprep.subr.mxu0 0.0
        %2497 = vmatpush1.msra.mxu0 0.0
        %2498 = vmatprep.subr.mxu0 0.0
        %2499 = vmatpush1.msra.mxu0 0.0
        %2500 = vmatprep.subr.mxu0 0.0
        %2501 = vmatpush1.msra.mxu0 0.0
        %2502 = vmatprep.subr.mxu0 0.0
        %2503 = vmatpush1.msra.mxu0 0.0
        %2504 = vmatprep.subr.mxu0 0.0
        %2505 = vmatpush1.msra.mxu0 0.0
        %2506 = vmatprep.subr.mxu0 0.0
        %2507 = vmatpush1.msra.mxu0 0.0
        %2508 = vmatprep.subr.mxu0 0.0
        %2509 = vmatpush1.msra.mxu0 0.0
        %2510 = vmatprep.subr.mxu0 0.0
        %2511 = vmatpush1.msra.mxu0 0.0
        %2512 = vmatprep.subr.mxu0 0.0
        %2513 = vmatpush1.msra.mxu0 0.0
        %2514 = vmatprep.subr.mxu0 0.0
        %2515 = vmatpush1.msra.mxu0 0.0
        %2516 = vmatprep.subr.mxu0 0.0
        %2517 = vmatpush1.msra.mxu0 0.0
        %2518 = vmatprep.subr.mxu0 0.0
        %2519 = vmatpush1.msra.mxu0 0.0
        %2520 = vmatprep.subr.mxu0 0.0
        %2521 = vmatpush1.msra.mxu0 0.0
        %2522 = vmatprep.subr.mxu0 0.0
        %2523 = vmatpush1.msra.mxu0 0.0
        %2524 = vmatprep.subr.mxu0 0.0
        %2525 = vmatpush1.msra.mxu0 0.0
        %2526 = vmatprep.subr.mxu0 0.0
        %2527 = vmatpush1.msra.mxu0 0.0
        %2528 = vmatprep.subr.mxu0 0.0
        %2529 = vmatpush1.msra.mxu0 0.0
        %2530 = vmatprep.subr.mxu0 0.0
        %2531 = vmatpush1.msra.mxu0 0.0
        %2532 = vmatprep.subr.mxu0 0.0
        %2533 = vmatpush1.msra.mxu0 0.0
        %2534 = vmatprep.subr.mxu0 0.0
        %2535 = vmatpush1.msra.mxu0 0.0
        %2536 = vmatprep.subr.mxu0 0.0
        %2537 = vmatpush1.msra.mxu0 0.0
        %2538 = vmatprep.subr.mxu0 0.0
        %2539 = vmatpush1.msra.mxu0 0.0
        %2540 = vmatprep.subr.mxu0 0.0
        %2541 = vmatpush1.msra.mxu0 0.0
        %2542 = vmatprep.subr.mxu0 0.0
        %2543 = vmatpush1.msra.mxu0 0.0
        %2544 = vmatprep.subr.mxu0 0.0
        %2545 = vmatpush1.msra.mxu0 0.0
        %2546 = vmatprep.subr.mxu0 0.0
        %2547 = vmatpush1.msra.mxu0 0.0
        %2548 = vmatprep.subr.mxu0 0.0
        %2549 = vmatpush1.msra.mxu0 0.0
        %2550 = vmatprep.subr.mxu0 0.0
        %2551 = vmatpush1.msra.mxu0 0.0
        %2552 = vmatprep.mubr.f32.mxu0 0.0
        %2553 = vmatmul.mubr.f32.gmra.mrb[0].mxu0 %v2486
        %v2554 = vpop.f32.mrb[0].mxu0
        %v2555 = vadd.f32 0.0, %v2554
        %v2556 = vpop.f32.mrb[0].mxu0
        %2557 = vdwg.mxu0
        %v2558 = vadd.f32 %v2481, %v2555
        %vm2559 = vcmask 261120
        %2560 = vst.msk [vmem:[%s601] sm:$0xff] %vm2559, %v2558
        %s2561 = sand.u32 %s388, 1
        %s2562 = scalar_lea.sflag [#allocation4], %s2561
        %s2563 = sand.u32 %s388, 1
        %s2564 = smul.addr %s2563, 8
        %s2565 = scalar_lea.vmem [#allocation13], %s2564
        // Predicated region
        $region109: #{data_embedding_forward.1} parent=83 // pred_check
          %p2566 = pneg %p398
        $region110: #{data_embedding_forward.1} parent=83 // pred_check_branch
          %2568 = sbr.rel (%p2566) target = $region112
        $region111: #{data_embedding_forward.1} parent=83 // pred_region
          %s2570 = ssub.s32 128, 128
          %2571 = vsyncadd %s2562, %s2570
          %s2572 = smul.addr %s34, 128
          %s2573 = scalar_lea.hbm %s16, %s2572
          %s2575 = sshll.u32 %s2565, 4
          %s2576 = int_to_ptr.vmem [resolvable:$true] %s2575
          %2578 = dma.vmem_to_hbm [thread:$0]  %s2576, 128, %s2573, %s2562
        $region112: #{data_embedding_forward.1} parent=83 // pred_fallthru
          _
      $region84: #{data_embedding_forward.1} parent=5 // pred_fallthru
        _
      %p2579 = scmp.le.s32.totalorder 2, %s29
      // Predicated region
      $region113: #{data_embedding_forward.1} parent=5 // pred_check
        %p2580 = pneg %p2579
      $region114: #{data_embedding_forward.1} parent=5 // pred_check_branch
        %2582 = sbr.rel (%p2580) target = $region116
      $region115: #{data_embedding_forward.1} parent=5 // pred_region
        %s2583 = ssub.s32 %s29, 2
        // Predicated region
        $region117: #{data_embedding_forward.1} parent=115 // pred_check
          %p2584 = pneg %p404
        $region118: #{data_embedding_forward.1} parent=115 // pred_check_branch
          %2586 = sbr.rel (%p2584) target = $region120
        $region119: #{data_embedding_forward.1} parent=115 // pred_region
          %s2587 = sand.u32 %s389, 1
          %s2588 = scalar_lea.sflag [#allocation4], %s2587
          %s2589 = sand.u32 %s389, 1
          %s2590 = smul.addr %s2589, 8
          %s2591 = scalar_lea.vmem [#allocation13], %s2590
          %2592 = dma.done %s2588, 128
        $region120: #{data_embedding_forward.1} parent=115 // pred_fallthru
          _
      $region116: #{data_embedding_forward.1} parent=5 // pred_fallthru
        _
    $region6: #{data_embedding_forward.1} parent=1 // loop_footer
      %s33 = sadd.s32 1, %s29
    $region7: #{data_embedding_forward.1} parent=1 // loop_footer_branch
      %28 = sbr.rel target = $region3
    $region8: #{data_embedding_forward.1} parent=1 // loop_exit
      _
    %2593 = vsyncpa [#allocation3], 1
    %s2594 = scalar_lea.sflag [#allocation3], 1
    %2595 = vsyncpa %s2594, 1
    %2596 = vsyncpa [#allocation6], 1
    %2597 = vsyncpa [#allocation9], 1
    %2598 = vsyncpa [#allocation12], 1
    %2599 = vsyncpa [#allocation4], 1
    %s2600 = scalar_lea.sflag [#allocation4], 1
    %2601 = vsyncpa %s2600, 1

</llo_original>
